<compile_context>
chip_gen: v6e
topology: v6e:2x2x1
jax: 0.10.0
libtpu: 0.0.40
codegen_flags: <defaults>
</compile_context>

<pallas_src>
import functools

import numpy as np
import jax
import jax.numpy as jnp
from jax import lax
from jax.experimental import pallas as pl
from jax.experimental.pallas import tpu as pltpu


_VMEM_LIMIT_BYTES = 32 * 1024 * 1024     # safe scoped-VMEM limit on v5e/v6e/v7x
_BLOCK_TARGET_BYTES = 2 * 1024 * 1024    # per-step (in+out) block budget (x2 buffers)


def _shift_wrap(x, s, axis):
    """result[..., k, ...] = x[..., (k + s) % size, ...]   (static s >= 0)."""
    if s == 0:
        return x
    size = x.shape[axis]
    lo = lax.slice_in_dim(x, s, size, axis=axis)
    hi = lax.slice_in_dim(x, 0, s, axis=axis)
    return jnp.concatenate([lo, hi], axis=axis)


# ============================ fast (batched) path ============================

def _row_pool_slice(x_ref, t, Hp, tf):
    """Strided sublane load: rows t, t+tf, ..., t+(Hp-1)*tf of every plane."""
    if tf == 1:
        return x_ref[...]
    return x_ref[:, pl.ds(t, Hp, stride=tf), :]


def _cesp_fast_kernel(x_ref, swt_ref, o_ref, *, tf, Hp, top, bottom,
                      pool_type, scale, op_dtype):
    """B planes per grid step.

    x_ref  : (B, H, W)          input planes
    swt_ref: (W, W_out)         0/1 column pool-sum/select + tile + pad matrix
    o_ref  : (B, H_out, W_out)  output planes
    """
    B, _, W = x_ref.shape
    W_out = o_ref.shape[-1]

    # ---- H-direction pooling: tf strided sublane loads (VPU adds / maxes) ----
    if pool_type == "max":
        acc = _row_pool_slice(x_ref, 0, Hp, tf)
        for t in range(1, tf):
            acc = jnp.maximum(acc, _row_pool_slice(x_ref, t, Hp, tf))
        # W-direction sliding-window max at every column (wrap-around shifts);
        # SWT only ever selects columns whose window is valid / meant to wrap.
        win = acc
        for j in range(1, tf):
            win = jnp.maximum(win, _shift_wrap(acc, j, axis=2))
        pooled = win.astype(op_dtype)
    else:  # 'avg': plain sums here; the single 1/tf^2 scale is applied in f32 below.
        acc = _row_pool_slice(x_ref, 0, Hp, tf).astype(jnp.float32)
        for t in range(1, tf):
            acc = acc + _row_pool_slice(x_ref, t, Hp, tf).astype(jnp.float32)
        pooled = acc.astype(op_dtype)

    # ---- W-direction window-sum/selection + tiling + zero-pad: ONE MXU matmul
    #      with M = B*Hp (batched planes fill the M dimension). Pad Hp to a
    #      sublane multiple so the reshapes around the matmul are tile-aligned.
    Hp_pad = -(-Hp // 8) * 8
    if Hp_pad != Hp:
        pooled = jnp.concatenate(
            [pooled, jnp.zeros((B, Hp_pad - Hp, W), pooled.dtype)], axis=1)
    yw = jnp.dot(pooled.reshape(B * Hp_pad, W), swt_ref[...],
                 preferred_element_type=jnp.float32)
    yw = yw.reshape(B, Hp_pad, W_out)[:, :Hp, :]
    if scale != 1.0:
        yw = yw * jnp.float32(scale)

    # ---- H-direction tiling (tf copies) + zero-pad rows; one full store ----
    tiled = jnp.concatenate([yw] * tf, axis=1) if tf > 1 else yw   # (B, Hc, W_out)
    parts = []
    if top:
        parts.append(jnp.zeros((B, top, W_out), jnp.float32))
    parts.append(tiled)
    if bottom:
        parts.append(jnp.zeros((B, bottom, W_out), jnp.float32))
    full = jnp.concatenate(parts, axis=1) if len(parts) > 1 else tiled
    o_ref[...] = full.astype(o_ref.dtype)


def _fast_geometry(H, W, tf, pool_type, tp_order):
    """SWT (W, W_out) 0/1 matrix + output geometry for the fast path."""
    if tp_order == "pool_first":
        Hp, Wp = H // tf, W // tf
        Hc, Wc = Hp * tf, Wp * tf
        diffX, diffY = H - Hc, W - Wc            # module quirk: diffX (from H) pads W,
        H_out, W_out = Hc + diffY, Wc + diffX    # diffY (from W) pads H.
        top, bottom, left = diffY // 2, diffY - diffY // 2, diffX // 2
        SWT = np.zeros((W, W_out), np.float32)
        for w in range(Wc):
            b0 = (w % Wp) * tf
            if pool_type == "avg":
                SWT[b0:b0 + tf, left + w] = 1.0    # window sum (scale applied later)
            else:
                SWT[b0, left + w] = 1.0            # select the window-start column
    else:  # 'tile_first' (fast path requires tf | H); W windows may wrap.
        assert H % tf == 0
        Hp = H // tf
        H_out, W_out = H, W
        top = bottom = 0
        SWT = np.zeros((W, W_out), np.float32)
        for w in range(W_out):
            if pool_type == "avg":
                for j in range(tf):
                    SWT[(w * tf + j) % W, w] += 1.0
            else:
                SWT[(w * tf) % W, w] = 1.0
    return SWT, Hp, H_out, W_out, top, bottom


def _pick_plane_batch(NC, per_plane_bytes):
    """Largest divisor of NC keeping one (in+out) block under the byte target."""
    cap = max(1, min(256, NC, int(_BLOCK_TARGET_BYTES // max(per_plane_bytes, 1))))
    for b in range(cap, 0, -1):
        if NC % b == 0:
            return b
    return 1


def _invariant_spec(block_shape, index_map):
    """BlockSpec for a grid-invariant operand; single-buffered when supported."""
    if hasattr(pl, "Buffered"):
        try:
            return pl.BlockSpec(block_shape, index_map, pipeline_mode=pl.Buffered(1))
        except TypeError:  # older BlockSpec without pipeline_mode
            pass
    return pl.BlockSpec(block_shape, index_map)


def _cesp_fast(x, tf, pool_type, tp_order):
    N, C, H, W = x.shape
    NC = N * C
    SWT_np, Hp, H_out, W_out, top, bottom = _fast_geometry(
        H, W, tf, pool_type, tp_order)

    # bf16 inputs keep bf16 MXU operands (0/1 matrices are exact in bf16);
    # everything else runs the MXU in f32.  Accumulation is f32 either way.
    op_dtype = jnp.bfloat16 if x.dtype == jnp.bfloat16 else jnp.float32
    SWT = jnp.asarray(SWT_np, dtype=op_dtype)
    scale = 1.0 / float(tf * tf) if pool_type == "avg" else 1.0

    itemsize = jnp.dtype(x.dtype).itemsize
    per_plane_bytes = (H * W + H_out * W_out) * itemsize
    B = _pick_plane_batch(NC, per_plane_bytes)
    grid = (NC // B,)

    x3 = x.reshape(NC, H, W)   # metadata-only reshape; no transpose / HBM copy
    kernel = functools.partial(
        _cesp_fast_kernel, tf=tf, Hp=Hp, top=top, bottom=bottom,
        pool_type=pool_type, scale=scale, op_dtype=op_dtype)

    cost = pl.CostEstimate(
        flops=int(2 * NC * Hp * W * W_out),
        transcendentals=0,
        bytes_accessed=int(NC * per_plane_bytes + SWT.size * SWT.dtype.itemsize))

    def call(dim_sem, swt_spec):
        return pl.pallas_call(
            kernel,
            grid=grid,
            in_specs=[pl.BlockSpec((B, H, W), lambda c: (c, 0, 0)), swt_spec],
            out_specs=pl.BlockSpec((B, H_out, W_out), lambda c: (c, 0, 0)),
            out_shape=jax.ShapeDtypeStruct((NC, H_out, W_out), x.dtype),
            compiler_params=pltpu.CompilerParams(
                dimension_semantics=dim_sem,
                vmem_limit_bytes=_VMEM_LIMIT_BYTES),
            cost_estimate=cost,
        )(x3, SWT)

    plain_spec = pl.BlockSpec((W, W_out), lambda c: (0, 0))
    single_buf_spec = _invariant_spec((W, W_out), lambda c: (0, 0))
    core_par = getattr(pltpu, "CORE_PARALLEL", None)

    attempts = []
    if core_par is not None:                      # v7x: shard NC over both TCs
        attempts.append(((core_par,), single_buf_spec))
    attempts.append((("parallel",), single_buf_spec))
    attempts.append((("parallel",), plain_spec))  # in case Buffered(1) is rejected

    err = None
    for dim_sem, swt_spec in attempts:
        try:
            out3 = call(dim_sem, swt_spec)
            return out3.reshape(N, C, H_out, W_out)
        except Exception as e:  # noqa: BLE001 - try the next, more portable variant
            err = e
    raise err


# =================== legacy (proven) per-plane fallback path ===================

def _cesp_legacy_kernel(x_ref, sh_ref, swt_ref, o_ref, *, tile_factor, pool_type):
    """One (H, W) plane per grid step; pool/tile/pad folded into two matmuls."""
    tf = tile_factor
    x = x_ref[...].astype(jnp.float32)

    if pool_type == "max":
        m = x
        for j in range(1, tf):
            m = jnp.maximum(m, _shift_wrap(x, j, axis=1))
        acc = m
        for i in range(1, tf):
            acc = jnp.maximum(acc, _shift_wrap(m, i, axis=0))
    else:  # 'avg' -- window average folded into SH / SWT
        acc = x

    yw = jnp.dot(acc, swt_ref[...], preferred_element_type=jnp.float32)   # (H, W_out)
    y = jnp.dot(sh_ref[...], yw, preferred_element_type=jnp.float32)      # (H_out, W_out)
    o_ref[...] = y.astype(o_ref.dtype)


def _gather_matrices(H, W, tf, pool_type, tp_order):
    """Build SH (H_out, H) and SW^T (W, W_out) folding pool/tile/pad."""
    if tp_order == "pool_first":
        Hp, Wp = H // tf, W // tf
        Hc, Wc = Hp * tf, Wp * tf
        diffX, diffY = H - Hc, W - Wc
        H_out, W_out = Hc + diffY, Wc + diffX
        top, left = diffY // 2, diffX // 2
        SH = np.zeros((H_out, H), np.float32)
        SW = np.zeros((W_out, W), np.float32)
        for h in range(Hc):
            a0 = (h % Hp) * tf
            if pool_type == "avg":
                SH[top + h, a0:a0 + tf] = 1.0 / tf
            else:
                SH[top + h, a0] = 1.0
        for w in range(Wc):
            b0 = (w % Wp) * tf
            if pool_type == "avg":
                SW[left + w, b0:b0 + tf] = 1.0 / tf
            else:
                SW[left + w, b0] = 1.0
    else:  # 'tile_first' -- output is exactly (H, W), windows wrap around.
        H_out, W_out = H, W
        SH = np.zeros((H_out, H), np.float32)
        SW = np.zeros((W_out, W), np.float32)
        for h in range(H_out):
            if pool_type == "avg":
                for i in range(tf):
                    SH[h, (h * tf + i) % H] += 1.0 / tf
            else:
                SH[h, (h * tf) % H] = 1.0
        for w in range(W_out):
            if pool_type == "avg":
                for j in range(tf):
                    SW[w, (w * tf + j) % W] += 1.0 / tf
            else:
                SW[w, (w * tf) % W] = 1.0
    return jnp.asarray(SH), jnp.asarray(SW.T), (H_out, W_out)


def _cesp_legacy(x, tf, pool_type, tp_order):
    N, C, H, W = x.shape
    SH, SWT, (H_out, W_out) = _gather_matrices(H, W, tf, pool_type, tp_order)
    NC = N * C
    x3 = x.reshape(NC, H, W)
    kernel = functools.partial(_cesp_legacy_kernel, tile_factor=tf, pool_type=pool_type)

    itemsize = jnp.dtype(x.dtype).itemsize
    flops = 2 * NC * (H * W * W_out + H_out * H * W_out)
    bytes_accessed = (NC * H * W + NC * H_out * W_out) * itemsize + (SH.size + SWT.size) * 4

    out3 = pl.pallas_call(
        kernel,
        grid=(NC,),
        in_specs=[
            pl.BlockSpec((None, H, W), lambda c: (c, 0, 0)),
            pl.BlockSpec((H_out, H), lambda c: (0, 0)),
            pl.BlockSpec((W, W_out), lambda c: (0, 0)),
        ],
        out_specs=pl.BlockSpec((None, H_out, W_out), lambda c: (c, 0, 0)),
        out_shape=jax.ShapeDtypeStruct((NC, H_out, W_out), x.dtype),
        compiler_params=pltpu.CompilerParams(dimension_semantics=("parallel",)),
        cost_estimate=pl.CostEstimate(
            flops=flops, transcendentals=0, bytes_accessed=bytes_accessed),
    )(x3, SH, SWT)
    return out3.reshape(N, C, H_out, W_out)


# ================================ dispatcher ================================

def cesp_forward(x, tile_factor, pool_type, tp_order):
    """x: (N, C, H, W). Returns (N, C, H_out, W_out) matching CESP.forward."""
    assert pool_type in ("avg", "max"), (
        "TODO(synk): 'bilinear' (antialias) and 'conv' pool types not implemented")
    assert tp_order in ("pool_first", "tile_first")
    N, C, H, W = x.shape
    tf = int(tile_factor)
    assert 1 <= tf <= min(H, W)

    # 'tile_first' with tf not dividing H needs a wrap-around row gather that
    # the strided-load fast path cannot express; route it (and any fast-path
    # lowering failure) to the proven selection-matmul kernel.
    if tp_order == "pool_first" or H % tf == 0:
        try:
            return _cesp_fast(x, tf, pool_type, tp_order)
        except Exception:  # noqa: BLE001 - only effective when called eagerly
            pass
    return _cesp_legacy(x, tf, pool_type, tp_order)


# ----------------------------- pure-JAX reference -----------------------------

def _pool_ref(x, tf, pool_type):
    N, C, H, W = x.shape
    Hp, Wp = H // tf, W // tf
    xc = x[:, :, : Hp * tf, : Wp * tf].reshape(N, C, Hp, tf, Wp, tf)
    if pool_type == "avg":
        return xc.mean(axis=(3, 5))
    return xc.max(axis=(3, 5))


def _cesp_reference(x, tile_factor, pool_type, tp_order):
    N, C, H, W = x.shape
    tf = tile_factor
    if tp_order == "pool_first":
        y = _pool_ref(x, tf, pool_type)
        y = jnp.tile(y, (1, 1, tf, tf))
    else:
        y = jnp.tile(x, (1, 1, tf, tf))
        y = _pool_ref(y, tf, pool_type)
    diffX = H - y.shape[2]
    diffY = W - y.shape[3]
    # F.pad(x, [diffX//2, diffX-diffX//2, diffY//2, diffY-diffY//2]):
    # first pair pads the last dim (W) with diffX, second pair pads H with diffY.
    return jnp.pad(y, ((0, 0), (0, 0),
                       (diffY // 2, diffY - diffY // 2),
                       (diffX // 2, diffX - diffX // 2)))


if __name__ == "__main__":
    key = jax.random.PRNGKey(0)
    x = jax.random.normal(key, (2, 4, 16, 16), dtype=jnp.float32)

    configs = [
        (2, "avg", "pool_first"),
        (2, "max", "pool_first"),
        (2, "avg", "tile_first"),
        (2, "max", "tile_first"),
        (3, "avg", "pool_first"),   # non-divisible -> exercises the zero-pad path
        (3, "max", "tile_first"),   # wrap-around rows -> proven fallback kernel
    ]
    for tf, ptype, order in configs:
        out = jax.block_until_ready(cesp_forward(x, tf, ptype, order))
        ref = _cesp_reference(x, tf, ptype, order)
        assert out.shape == ref.shape, (tf, ptype, order, out.shape, ref.shape)
        assert jnp.allclose(out, ref, atol=1e-4, rtol=1e-4), (tf, ptype, order)

    print("KERNEL_OK")
</pallas_src>

<mosaic_0001>
module attributes {stable_mosaic.version = 11 : i64} {
  func.func @_cesp_fast_kernel(%arg0: i32, %arg1: memref<8x16x16xf32, #tpu.memory_space<vmem>>, %arg2: memref<16x16xf32, #tpu.memory_space<vmem>>, %arg3: memref<8x16x16xf32, #tpu.memory_space<vmem>>) attributes {dimension_semantics = [#tpu.dimension_semantics<core_parallel>], iteration_bounds = array<i64: 1>, scalar_prefetch = 0 : i64, scratch_operands = 0 : i64, tpu.core_type = #tpu.core_type<tc>, window_params = [{transform_indices = @transform_0, window_bounds = array<i64: 8, 16, 16>}, {pipeline_mode = #tpu.pipeline_mode<synchronous>, transform_indices = @transform_1, window_bounds = array<i64: 16, 16>}, {transform_indices = @transform_2, window_bounds = array<i64: 8, 16, 16>}]} {
    %c0 = arith.constant 0 : index
    %c0_0 = arith.constant 0 : index
    %c0_1 = arith.constant 0 : index
    %0 = tpu.strided_load %arg1[%c0, %c0_0, %c0_1] {strides = array<i32: 1, 2, 1>} : memref<8x16x16xf32, #tpu.memory_space<vmem>>, vector<8x8x16xf32>
    %c0_2 = arith.constant 0 : index
    %c1 = arith.constant 1 : index
    %c0_3 = arith.constant 0 : index
    %1 = tpu.strided_load %arg1[%c0_2, %c1, %c0_3] {strides = array<i32: 1, 2, 1>} : memref<8x16x16xf32, #tpu.memory_space<vmem>>, vector<8x8x16xf32>
    %2 = arith.addf %0, %1 : vector<8x8x16xf32>
    %3 = vector.shape_cast %2 : vector<8x8x16xf32> to vector<64x16xf32>
    %c0_4 = arith.constant 0 : index
    %c0_5 = arith.constant 0 : index
    %4 = vector.load %arg2[%c0_4, %c0_5] : memref<16x16xf32, #tpu.memory_space<vmem>>, vector<16x16xf32>
    %cst = arith.constant dense<0.000000e+00> : vector<64x16xf32>
    %5 = tpu.matmul %3, %4, %cst {dimension_numbers = #tpu.dot_dimension_numbers<[1], [0], [0], [1], [0, 0, 1, 1], [], []>} : vector<64x16xf32>, vector<16x16xf32>, vector<64x16xf32> -> vector<64x16xf32>
    %6 = vector.shape_cast %5 : vector<64x16xf32> to vector<8x8x16xf32>
    %cst_6 = arith.constant 2.500000e-01 : f32
    %7 = vector.broadcast %cst_6 : f32 to vector<8x8x16xf32>
    %8 = arith.mulf %6, %7 : vector<8x8x16xf32>
    %9 = tpu.concatenate %8, %8 in 1 : vector<8x8x16xf32>, vector<8x8x16xf32> -> vector<8x16x16xf32>
    %c0_7 = arith.constant 0 : index
    %c0_8 = arith.constant 0 : index
    %c0_9 = arith.constant 0 : index
    %10 = vector.load %arg3[%c0_7, %c0_8, %c0_9] : memref<8x16x16xf32, #tpu.memory_space<vmem>>, vector<8x16x16xf32>
    tpu.vector_store %arg3[%c0_7, %c0_8, %c0_9], %9 {strides = array<i32>} : memref<8x16x16xf32, #tpu.memory_space<vmem>>, vector<8x16x16xf32>,
    return
  }
  func.func @transform_0(%arg0: i32) -> (i32, i32, i32) {
    %c0_i32 = arith.constant 0 : i32
    %c0_i32_0 = arith.constant 0 : i32
    %c0_i32_1 = arith.constant 0 : i32
    return %arg0, %c0_i32, %c0_i32_0 : i32, i32, i32
  }
  func.func @transform_1(%arg0: i32) -> (i32, i32) {
    %c0_i32 = arith.constant 0 : i32
    %c0_i32_0 = arith.constant 0 : i32
    %c0_i32_1 = arith.constant 0 : i32
    return %c0_i32, %c0_i32_0 : i32, i32
  }
  func.func @transform_2(%arg0: i32) -> (i32, i32, i32) {
    %c0_i32 = arith.constant 0 : i32
    %c0_i32_0 = arith.constant 0 : i32
    %c0_i32_1 = arith.constant 0 : i32
    return %arg0, %c0_i32, %c0_i32_0 : i32, i32, i32
  }
}

module attributes {stable_mosaic.version = 11 : i64} {
  func.func @_cesp_fast_kernel(%arg0: i32, %arg1: memref<8x16x16xf32, #tpu.memory_space<vmem>>, %arg2: memref<16x16xf32, #tpu.memory_space<vmem>>, %arg3: memref<8x16x16xf32, #tpu.memory_space<vmem>>) attributes {dimension_semantics = [#tpu.dimension_semantics<parallel>], iteration_bounds = array<i64: 1>, scalar_prefetch = 0 : i64, scratch_operands = 0 : i64, tpu.core_type = #tpu.core_type<tc>, window_params = [{transform_indices = @transform_0, window_bounds = array<i64: 8, 16, 16>}, {pipeline_mode = #tpu.pipeline_mode<synchronous>, transform_indices = @transform_1, window_bounds = array<i64: 16, 16>}, {transform_indices = @transform_2, window_bounds = array<i64: 8, 16, 16>}]} {
    %c0 = arith.constant 0 : index
    %c0_0 = arith.constant 0 : index
    %c0_1 = arith.constant 0 : index
    %0 = tpu.strided_load %arg1[%c0, %c0_0, %c0_1] {strides = array<i32: 1, 2, 1>} : memref<8x16x16xf32, #tpu.memory_space<vmem>>, vector<8x8x16xf32>
    %c0_2 = arith.constant 0 : index
    %c1 = arith.constant 1 : index
    %c0_3 = arith.constant 0 : index
    %1 = tpu.strided_load %arg1[%c0_2, %c1, %c0_3] {strides = array<i32: 1, 2, 1>} : memref<8x16x16xf32, #tpu.memory_space<vmem>>, vector<8x8x16xf32>
    %2 = arith.addf %0, %1 : vector<8x8x16xf32>
    %3 = vector.shape_cast %2 : vector<8x8x16xf32> to vector<64x16xf32>
    %c0_4 = arith.constant 0 : index
    %c0_5 = arith.constant 0 : index
    %4 = vector.load %arg2[%c0_4, %c0_5] : memref<16x16xf32, #tpu.memory_space<vmem>>, vector<16x16xf32>
    %cst = arith.constant dense<0.000000e+00> : vector<64x16xf32>
    %5 = tpu.matmul %3, %4, %cst {dimension_numbers = #tpu.dot_dimension_numbers<[1], [0], [0], [1], [0, 0, 1, 1], [], []>} : vector<64x16xf32>, vector<16x16xf32>, vector<64x16xf32> -> vector<64x16xf32>
    %6 = vector.shape_cast %5 : vector<64x16xf32> to vector<8x8x16xf32>
    %cst_6 = arith.constant 2.500000e-01 : f32
    %7 = vector.broadcast %cst_6 : f32 to vector<8x8x16xf32>
    %8 = arith.mulf %6, %7 : vector<8x8x16xf32>
    %9 = tpu.concatenate %8, %8 in 1 : vector<8x8x16xf32>, vector<8x8x16xf32> -> vector<8x16x16xf32>
    %c0_7 = arith.constant 0 : index
    %c0_8 = arith.constant 0 : index
    %c0_9 = arith.constant 0 : index
    %10 = vector.load %arg3[%c0_7, %c0_8, %c0_9] : memref<8x16x16xf32, #tpu.memory_space<vmem>>, vector<8x16x16xf32>
    tpu.vector_store %arg3[%c0_7, %c0_8, %c0_9], %9 {strides = array<i32>} : memref<8x16x16xf32, #tpu.memory_space<vmem>>, vector<8x16x16xf32>,
    return
  }
  func.func @transform_0(%arg0: i32) -> (i32, i32, i32) {
    %c0_i32 = arith.constant 0 : i32
    %c0_i32_0 = arith.constant 0 : i32
    %c0_i32_1 = arith.constant 0 : i32
    return %arg0, %c0_i32, %c0_i32_0 : i32, i32, i32
  }
  func.func @transform_1(%arg0: i32) -> (i32, i32) {
    %c0_i32 = arith.constant 0 : i32
    %c0_i32_0 = arith.constant 0 : i32
    %c0_i32_1 = arith.constant 0 : i32
    return %c0_i32, %c0_i32_0 : i32, i32
  }
  func.func @transform_2(%arg0: i32) -> (i32, i32, i32) {
    %c0_i32 = arith.constant 0 : i32
    %c0_i32_0 = arith.constant 0 : i32
    %c0_i32_1 = arith.constant 0 : i32
    return %arg0, %c0_i32, %c0_i32_0 : i32, i32, i32
  }
}

module attributes {stable_mosaic.version = 11 : i64} {
  func.func @_cesp_fast_kernel(%arg0: i32, %arg1: memref<8x16x16xf32, #tpu.memory_space<vmem>>, %arg2: memref<16x16xf32, #tpu.memory_space<vmem>>, %arg3: memref<8x16x16xf32, #tpu.memory_space<vmem>>) attributes {dimension_semantics = [#tpu.dimension_semantics<parallel>], iteration_bounds = array<i64: 1>, scalar_prefetch = 0 : i64, scratch_operands = 0 : i64, tpu.core_type = #tpu.core_type<tc>, window_params = [{transform_indices = @transform_0, window_bounds = array<i64: 8, 16, 16>}, {pipeline_mode = #tpu.pipeline_mode<synchronous>, transform_indices = @transform_1, window_bounds = array<i64: 16, 16>}, {transform_indices = @transform_2, window_bounds = array<i64: 8, 16, 16>}]} {
    %c0 = arith.constant 0 : index
    %c0_0 = arith.constant 0 : index
    %c0_1 = arith.constant 0 : index
    %0 = tpu.strided_load %arg1[%c0, %c0_0, %c0_1] {strides = array<i32: 1, 2, 1>} : memref<8x16x16xf32, #tpu.memory_space<vmem>>, vector<8x8x16xf32>
    %c0_2 = arith.constant 0 : index
    %c1 = arith.constant 1 : index
    %c0_3 = arith.constant 0 : index
    %1 = tpu.strided_load %arg1[%c0_2, %c1, %c0_3] {strides = array<i32: 1, 2, 1>} : memref<8x16x16xf32, #tpu.memory_space<vmem>>, vector<8x8x16xf32>
    %2 = arith.addf %0, %1 : vector<8x8x16xf32>
    %3 = vector.shape_cast %2 : vector<8x8x16xf32> to vector<64x16xf32>
    %c0_4 = arith.constant 0 : index
    %c0_5 = arith.constant 0 : index
    %4 = vector.load %arg2[%c0_4, %c0_5] : memref<16x16xf32, #tpu.memory_space<vmem>>, vector<16x16xf32>
    %cst = arith.constant dense<0.000000e+00> : vector<64x16xf32>
    %5 = tpu.matmul %3, %4, %cst {dimension_numbers = #tpu.dot_dimension_numbers<[1], [0], [0], [1], [0, 0, 1, 1], [], []>} : vector<64x16xf32>, vector<16x16xf32>, vector<64x16xf32> -> vector<64x16xf32>
    %6 = vector.shape_cast %5 : vector<64x16xf32> to vector<8x8x16xf32>
    %cst_6 = arith.constant 2.500000e-01 : f32
    %7 = vector.broadcast %cst_6 : f32 to vector<8x8x16xf32>
    %8 = arith.mulf %6, %7 : vector<8x8x16xf32>
    %9 = tpu.concatenate %8, %8 in 1 : vector<8x8x16xf32>, vector<8x8x16xf32> -> vector<8x16x16xf32>
    %c0_7 = arith.constant 0 : index
    %c0_8 = arith.constant 0 : index
    %c0_9 = arith.constant 0 : index
    %10 = vector.load %arg3[%c0_7, %c0_8, %c0_9] : memref<8x16x16xf32, #tpu.memory_space<vmem>>, vector<8x16x16xf32>
    tpu.vector_store %arg3[%c0_7, %c0_8, %c0_9], %9 {strides = array<i32>} : memref<8x16x16xf32, #tpu.memory_space<vmem>>, vector<8x16x16xf32>,
    return
  }
  func.func @transform_0(%arg0: i32) -> (i32, i32, i32) {
    %c0_i32 = arith.constant 0 : i32
    %c0_i32_0 = arith.constant 0 : i32
    %c0_i32_1 = arith.constant 0 : i32
    return %arg0, %c0_i32, %c0_i32_0 : i32, i32, i32
  }
  func.func @transform_1(%arg0: i32) -> (i32, i32) {
    %c0_i32 = arith.constant 0 : i32
    %c0_i32_0 = arith.constant 0 : i32
    %c0_i32_1 = arith.constant 0 : i32
    return %c0_i32, %c0_i32_0 : i32, i32
  }
  func.func @transform_2(%arg0: i32) -> (i32, i32, i32) {
    %c0_i32 = arith.constant 0 : i32
    %c0_i32_0 = arith.constant 0 : i32
    %c0_i32_1 = arith.constant 0 : i32
    return %arg0, %c0_i32, %c0_i32_0 : i32, i32, i32
  }
}

module attributes {stable_mosaic.version = 11 : i64} {
  func.func @_cesp_legacy_kernel(%arg0: i32, %arg1: memref<1x16x16xf32, #tpu.memory_space<vmem>>, %arg2: memref<16x16xf32, #tpu.memory_space<vmem>>, %arg3: memref<16x16xf32, #tpu.memory_space<vmem>>, %arg4: memref<1x16x16xf32, #tpu.memory_space<vmem>>) attributes {dimension_semantics = [#tpu.dimension_semantics<parallel>], iteration_bounds = array<i64: 8>, scalar_prefetch = 0 : i64, scratch_operands = 0 : i64, tpu.core_type = #tpu.core_type<tc>, window_params = [{transform_indices = @transform_0, window_bounds = array<i64: 1, 16, 16>}, {pipeline_mode = #tpu.pipeline_mode<synchronous>, transform_indices = @transform_1, window_bounds = array<i64: 16, 16>}, {pipeline_mode = #tpu.pipeline_mode<synchronous>, transform_indices = @transform_2, window_bounds = array<i64: 16, 16>}, {transform_indices = @transform_3, window_bounds = array<i64: 1, 16, 16>}]} {
    %c0 = arith.constant 0 : index
    %c0_0 = arith.constant 0 : index
    %c0_1 = arith.constant 0 : index
    %0 = vector.load %arg1[%c0, %c0_0, %c0_1] : memref<1x16x16xf32, #tpu.memory_space<vmem>>, vector<1x16x16xf32>
    %1 = vector.shape_cast %0 : vector<1x16x16xf32> to vector<16x16xf32>
    %c0_2 = arith.constant 0 : index
    %c0_3 = arith.constant 0 : index
    %2 = vector.load %arg3[%c0_2, %c0_3] : memref<16x16xf32, #tpu.memory_space<vmem>>, vector<16x16xf32>
    %cst = arith.constant dense<0.000000e+00> : vector<16x16xf32>
    %3 = tpu.matmul %1, %2, %cst {dimension_numbers = #tpu.dot_dimension_numbers<[1], [0], [0], [1], [0, 0, 1, 1], [], []>} : vector<16x16xf32>, vector<16x16xf32>, vector<16x16xf32> -> vector<16x16xf32>
    %c0_4 = arith.constant 0 : index
    %c0_5 = arith.constant 0 : index
    %4 = vector.load %arg2[%c0_4, %c0_5] : memref<16x16xf32, #tpu.memory_space<vmem>>, vector<16x16xf32>
    %cst_6 = arith.constant dense<0.000000e+00> : vector<16x16xf32>
    %5 = tpu.matmul %4, %3, %cst_6 {dimension_numbers = #tpu.dot_dimension_numbers<[1], [0], [0], [1], [0, 0, 1, 1], [], []>} : vector<16x16xf32>, vector<16x16xf32>, vector<16x16xf32> -> vector<16x16xf32>
    %c0_7 = arith.constant 0 : index
    %c0_8 = arith.constant 0 : index
    %c0_9 = arith.constant 0 : index
    %6 = vector.load %arg4[%c0_7, %c0_8, %c0_9] : memref<1x16x16xf32, #tpu.memory_space<vmem>>, vector<1x16x16xf32>
    %7 = vector.shape_cast %6 : vector<1x16x16xf32> to vector<16x16xf32>
    %8 = vector.shape_cast %5 : vector<16x16xf32> to vector<1x16x16xf32>
    tpu.vector_store %arg4[%c0_7, %c0_8, %c0_9], %8 {strides = array<i32>} : memref<1x16x16xf32, #tpu.memory_space<vmem>>, vector<1x16x16xf32>,
    return
  }
  func.func @transform_0(%arg0: i32) -> (i32, i32, i32) {
    %c0_i32 = arith.constant 0 : i32
    %c0_i32_0 = arith.constant 0 : i32
    %c0_i32_1 = arith.constant 0 : i32
    return %arg0, %c0_i32, %c0_i32_0 : i32, i32, i32
  }
  func.func @transform_1(%arg0: i32) -> (i32, i32) {
    %c0_i32 = arith.constant 0 : i32
    %c0_i32_0 = arith.constant 0 : i32
    %c0_i32_1 = arith.constant 0 : i32
    return %c0_i32, %c0_i32_0 : i32, i32
  }
  func.func @transform_2(%arg0: i32) -> (i32, i32) {
    %c0_i32 = arith.constant 0 : i32
    %c0_i32_0 = arith.constant 0 : i32
    %c0_i32_1 = arith.constant 0 : i32
    return %c0_i32, %c0_i32_0 : i32, i32
  }
  func.func @transform_3(%arg0: i32) -> (i32, i32, i32) {
    %c0_i32 = arith.constant 0 : i32
    %c0_i32_0 = arith.constant 0 : i32
    %c0_i32_1 = arith.constant 0 : i32
    return %arg0, %c0_i32, %c0_i32_0 : i32, i32, i32
  }
}

</mosaic_0001>

<llo_original>
// kernel: tpu_custom_call.1
$region0: #{tpu_custom_call.1}
  #allocation0 [shape = 'u32[]', space=smem, size = 0x4, offset = 0x4, fixed_abs, tag = 'smem constant byte address 0x4 - core index']
  #allocation1 [shape = 'u32[144,128]{1,0:T(1,128)}', space=vmem, size = 0x12000, scoped, tag = 'internal scratch']
  %s0 = inlined_call_operand.hbm [shape: f32[8,16,16], index: 0, kind: input, shape index: {}]
  %s1 = inlined_call_operand.hbm [shape: f32[16,16], index: 1, kind: input, shape index: {}]
  %s2 = inlined_call_operand.hbm [shape: f32[8,16,16], index: 2, kind: output, shape index: {}]
  %s3 = sld [smem:[#allocation0]]
  $region26: #{tpu_custom_call.1} parent=0
    _
  %s5 = ssub.s32 1, %s3
  %s6 = scalar_select 0, %s5, %s3
  $region1: #{tpu_custom_call.1} parent=0
    #allocation2 [shape = 'u8[65536]{0}', space=vmem, size = 0x10000, scoped, tag = 'input window, operand 0, single buffered']
    #allocation3 [shape = 's32[1]{0}', space=sflag, size = 0x4, scoped, tag = 'scoped memory for tpu_custom_call.1']
    #allocation4 [shape = 's32[1]{0}', space=sflag, size = 0x4, scoped, tag = 'scoped memory for tpu_custom_call.1']
    #allocation5 [shape = 'u8[8192]{0}', space=vmem, size = 0x2000, scoped, tag = 'input window, operand 1, single buffered']
    #allocation6 [shape = 's32[1]{0}', space=sflag, size = 0x4, scoped, tag = 'scoped memory for tpu_custom_call.1']
    #allocation7 [shape = 'u8[65536]{0}', space=vmem, size = 0x10000, scoped, tag = 'output window, operand 0, single buffered']
    %7 = vsyncpa [#allocation3], 0
    %8 = vsyncpa [#allocation6], 0
    %9 = vsyncpa [#allocation4], 0
    // Predicated region
    $region2: #{tpu_custom_call.1} parent=1 // pred_check
      _
    $region3: #{tpu_custom_call.1} parent=1 // pred_check_branch
      %11 = sbr.rel (0) target = $region5
    $region4: #{tpu_custom_call.1} parent=1 // pred_region
      %s12 = smul.u32 8, %s6
      %s14 = ssub.s32 2048, 2048
      %15 = vsyncadd [#allocation3], %s14
      %s16 = smul.addr %s12, 2
      %s17 = smul.addr %s16, 128
      %s18 = scalar_lea.hbm %s0, %s17
      %s19 = sshll.u32 [#allocation2], 4
      %s20 = int_to_ptr.vmem [resolvable:$true] %s19
      %25 = dma.hbm_to_vmem [thread:$0]  %s18, 2048, %s20, [#allocation3], 128, 128, 8
    $region5: #{tpu_custom_call.1} parent=1 // pred_fallthru
      _
    // Predicated region
    $region6: #{tpu_custom_call.1} parent=1 // pred_check
      _
    $region7: #{tpu_custom_call.1} parent=1 // pred_check_branch
      %27 = sbr.rel (0) target = $region9
    $region8: #{tpu_custom_call.1} parent=1 // pred_region
      %s29 = ssub.s32 256, 256
      %30 = vsyncadd [#allocation6], %s29
      %s31 = sshll.u32 [#allocation5], 4
      %s32 = int_to_ptr.vmem [resolvable:$true] %s31
      %37 = dma.hbm_to_vmem [thread:$0]  %s1, 256, %s32, [#allocation6], 128, 128, 8
    $region9: #{tpu_custom_call.1} parent=1 // pred_fallthru
      _
    // Predicated region
    $region10: #{tpu_custom_call.1} parent=1 // pred_check
      _
    $region11: #{tpu_custom_call.1} parent=1 // pred_check_branch
      %39 = sbr.rel (0) target = $region13
    $region12: #{tpu_custom_call.1} parent=1 // pred_region
      %40 = dma.done [#allocation3], 2048
    $region13: #{tpu_custom_call.1} parent=1 // pred_fallthru
      _
    // Predicated region
    $region14: #{tpu_custom_call.1} parent=1 // pred_check
      _
    $region15: #{tpu_custom_call.1} parent=1 // pred_check_branch
      %42 = sbr.rel (0) target = $region17
    $region16: #{tpu_custom_call.1} parent=1 // pred_region
      %43 = dma.done [#allocation6], 256
    $region17: #{tpu_custom_call.1} parent=1 // pred_fallthru
      _
    %s44 = smul.u32 8, %s6
    %s45 = smul.u32 8, %s6
    %v46 = vld [vmem:[#allocation2] ss:$2 sm:$0xff]
    %s47 = scalar_lea.vmem [#allocation2], 16
    %v48 = vld [vmem:[%s47] ss:$2 sm:$0xff]
    %s49 = scalar_lea.vmem [#allocation2], 32
    %v50 = vld [vmem:[%s49] ss:$2 sm:$0xff]
    %s51 = scalar_lea.vmem [#allocation2], 48
    %v52 = vld [vmem:[%s51] ss:$2 sm:$0xff]
    %s53 = scalar_lea.vmem [#allocation2], 64
    %v54 = vld [vmem:[%s53] ss:$2 sm:$0xff]
    %s55 = scalar_lea.vmem [#allocation2], 80
    %v56 = vld [vmem:[%s55] ss:$2 sm:$0xff]
    %s57 = scalar_lea.vmem [#allocation2], 96
    %v58 = vld [vmem:[%s57] ss:$2 sm:$0xff]
    %s59 = scalar_lea.vmem [#allocation2], 112
    %v60 = vld [vmem:[%s59] ss:$2 sm:$0xff]
    %s61 = scalar_lea.vmem [#allocation2], 1
    %v62 = vld [vmem:[%s61] ss:$2 sm:$0xff]
    %s63 = scalar_lea.vmem [#allocation2], 17
    %v64 = vld [vmem:[%s63] ss:$2 sm:$0xff]
    %s65 = scalar_lea.vmem [#allocation2], 33
    %v66 = vld [vmem:[%s65] ss:$2 sm:$0xff]
    %s67 = scalar_lea.vmem [#allocation2], 49
    %v68 = vld [vmem:[%s67] ss:$2 sm:$0xff]
    %s69 = scalar_lea.vmem [#allocation2], 65
    %v70 = vld [vmem:[%s69] ss:$2 sm:$0xff]
    %s71 = scalar_lea.vmem [#allocation2], 81
    %v72 = vld [vmem:[%s71] ss:$2 sm:$0xff]
    %s73 = scalar_lea.vmem [#allocation2], 97
    %v74 = vld [vmem:[%s73] ss:$2 sm:$0xff]
    %s75 = scalar_lea.vmem [#allocation2], 113
    %v76 = vld [vmem:[%s75] ss:$2 sm:$0xff]
    %v77 = vadd.f32 %v46, %v62
    %v78 = vadd.f32 %v48, %v64
    %v79 = vadd.f32 %v50, %v66
    %v80 = vadd.f32 %v52, %v68
    %v81 = vadd.f32 %v54, %v70
    %v82 = vadd.f32 %v56, %v72
    %v83 = vadd.f32 %v58, %v74
    %v84 = vadd.f32 %v60, %v76
    %v85 = vld [vmem:[#allocation5] sm:$0xff]
    %v86 = vld [vmem:[#allocation5 + $0x8] sm:$0xff]
    %vm87 = vcmask 130048
    %v89 = vsel %vm87, %v77, 0
    %v92 = vsel %vm87, %v78, 0
    %v95 = vsel %vm87, %v79, 0
    %v98 = vsel %vm87, %v80, 0
    %v101 = vsel %vm87, %v81, 0
    %v104 = vsel %vm87, %v82, 0
    %v107 = vsel %vm87, %v83, 0
    %v110 = vsel %vm87, %v84, 0
    %112 = vmatprep.subr.mxu0 0.0
    %113 = vmatpush1.msra.mxu0 0.0
    %114 = vmatprep.subr.mxu0 0.0
    %115 = vmatpush1.msra.mxu0 0.0
    %116 = vmatprep.subr.mxu0 0.0
    %117 = vmatpush1.msra.mxu0 0.0
    %118 = vmatprep.subr.mxu0 0.0
    %119 = vmatpush1.msra.mxu0 0.0
    %120 = vmatprep.subr.mxu0 0.0
    %121 = vmatpush1.msra.mxu0 0.0
    %122 = vmatprep.subr.mxu0 0.0
    %123 = vmatpush1.msra.mxu0 0.0
    %124 = vmatprep.subr.mxu0 0.0
    %125 = vmatpush1.msra.mxu0 0.0
    %126 = vmatprep.subr.mxu0 0.0
    %127 = vmatpush1.msra.mxu0 0.0
    %128 = vmatprep.subr.mxu0 0.0
    %129 = vmatpush1.msra.mxu0 0.0
    %130 = vmatprep.subr.mxu0 0.0
    %131 = vmatpush1.msra.mxu0 0.0
    %132 = vmatprep.subr.mxu0 0.0
    %133 = vmatpush1.msra.mxu0 0.0
    %134 = vmatprep.subr.mxu0 0.0
    %135 = vmatpush1.msra.mxu0 0.0
    %136 = vmatprep.subr.mxu0 0.0
    %137 = vmatpush1.msra.mxu0 0.0
    %138 = vmatprep.subr.mxu0 0.0
    %139 = vmatpush1.msra.mxu0 0.0
    %140 = vmatprep.subr.mxu0 0.0
    %141 = vmatpush1.msra.mxu0 %v86
    %142 = vmatprep.subr.mxu0 0.0
    %143 = vmatpush1.msra.mxu0 %v85
    %144 = vmatprep.subr.mxu0 0.0
    %145 = vmatpush2.msra.mxu0 0.0
    %146 = vmatprep.subr.mxu0 0.0
    %147 = vmatpush2.msra.mxu0 0.0
    %148 = vmatprep.subr.mxu0 0.0
    %149 = vmatpush2.msra.mxu0 0.0
    %150 = vmatprep.subr.mxu0 0.0
    %151 = vmatpush2.msra.mxu0 0.0
    %152 = vmatprep.subr.mxu0 0.0
    %153 = vmatpush2.msra.mxu0 0.0
    %154 = vmatprep.subr.mxu0 0.0
    %155 = vmatpush2.msra.mxu0 0.0
    %156 = vmatprep.subr.mxu0 0.0
    %157 = vmatpush2.msra.mxu0 0.0
    %158 = vmatprep.subr.mxu0 0.0
    %159 = vmatpush2.msra.mxu0 0.0
    %160 = vmatprep.subr.mxu0 0.0
    %161 = vmatpush2.msra.mxu0 0.0
    %162 = vmatprep.subr.mxu0 0.0
    %163 = vmatpush2.msra.mxu0 0.0
    %164 = vmatprep.subr.mxu0 0.0
    %165 = vmatpush2.msra.mxu0 0.0
    %166 = vmatprep.subr.mxu0 0.0
    %167 = vmatpush2.msra.mxu0 0.0
    %168 = vmatprep.subr.mxu0 0.0
    %169 = vmatpush2.msra.mxu0 0.0
    %170 = vmatprep.subr.mxu0 0.0
    %171 = vmatpush2.msra.mxu0 0.0
    %172 = vmatprep.subr.mxu0 0.0
    %173 = vmatpush2.msra.mxu0 0.0
    %174 = vmatprep.subr.mxu0 0.0
    %175 = vmatpush2.msra.mxu0 0.0
    %176 = vmatprep.mubr.f32.mxu0 0.0
    %177 = vmatmul.mubr.f32.gmra.mxu0 %v89
    %v178 = vpop.f32.mrf.mxu0
    %v179 = vadd.f32 0.0, %v178
    %v180 = vpop.f32.mrf.mxu0
    %181 = vmatprep.mubr.f32.mxu0 0.0
    %182 = vmatmul.mubr.f32.gmra.mxu0 %v92
    %v183 = vpop.f32.mrf.mxu0
    %v184 = vadd.f32 0.0, %v183
    %v185 = vpop.f32.mrf.mxu0
    %186 = vmatprep.mubr.f32.mxu0 0.0
    %187 = vmatmul.mubr.f32.gmra.mxu0 %v95
    %v188 = vpop.f32.mrf.mxu0
    %v189 = vadd.f32 0.0, %v188
    %v190 = vpop.f32.mrf.mxu0
    %191 = vmatprep.mubr.f32.mxu0 0.0
    %192 = vmatmul.mubr.f32.gmra.mxu0 %v98
    %v193 = vpop.f32.mrf.mxu0
    %v194 = vadd.f32 0.0, %v193
    %v195 = vpop.f32.mrf.mxu0
    %196 = vmatprep.mubr.f32.mxu0 0.0
    %197 = vmatmul.mubr.f32.gmra.mxu0 %v101
    %v198 = vpop.f32.mrf.mxu0
    %v199 = vadd.f32 0.0, %v198
    %v200 = vpop.f32.mrf.mxu0
    %201 = vmatprep.mubr.f32.mxu0 0.0
    %202 = vmatmul.mubr.f32.gmra.mxu0 %v104
    %v203 = vpop.f32.mrf.mxu0
    %v204 = vadd.f32 0.0, %v203
    %v205 = vpop.f32.mrf.mxu0
    %206 = vmatprep.mubr.f32.mxu0 0.0
    %207 = vmatmul.mubr.f32.gmra.mxu0 %v107
    %v208 = vpop.f32.mrf.mxu0
    %v209 = vadd.f32 0.0, %v208
    %v210 = vpop.f32.mrf.mxu0
    %211 = vmatprep.mubr.f32.mxu0 0.0
    %212 = vmatmul.mubr.f32.gmra.mxu0 %v110
    %v213 = vpop.f32.mrf.mxu0
    %v214 = vadd.f32 0.0, %v213
    %v215 = vpop.f32.mrf.mxu0
    %216 = vdwg.mxu0
    %v217 = vmul.f32 %v179, 0.25
    %v218 = vmul.f32 %v184, 0.25
    %v219 = vmul.f32 %v189, 0.25
    %v220 = vmul.f32 %v194, 0.25
    %v221 = vmul.f32 %v199, 0.25
    %v222 = vmul.f32 %v204, 0.25
    %v223 = vmul.f32 %v209, 0.25
    %v224 = vmul.f32 %v214, 0.25
    %225 = vst.msk [vmem:[#allocation7] sm:$0xff] %vm87, %v217
    %226 = vst.msk [vmem:[#allocation7 + $0x8] sm:$0xff] %vm87, %v217
    %227 = vst.msk [vmem:[#allocation7 + $0x10] sm:$0xff] %vm87, %v218
    %228 = vst.msk [vmem:[#allocation7 + $0x18] sm:$0xff] %vm87, %v218
    %229 = vst.msk [vmem:[#allocation7 + $0x20] sm:$0xff] %vm87, %v219
    %230 = vst.msk [vmem:[#allocation7 + $0x28] sm:$0xff] %vm87, %v219
    %231 = vst.msk [vmem:[#allocation7 + $0x30] sm:$0xff] %vm87, %v220
    %232 = vst.msk [vmem:[#allocation7 + $0x38] sm:$0xff] %vm87, %v220
    %233 = vst.msk [vmem:[#allocation7 + $0x40] sm:$0xff] %vm87, %v221
    %234 = vst.msk [vmem:[#allocation7 + $0x48] sm:$0xff] %vm87, %v221
    %235 = vst.msk [vmem:[#allocation7 + $0x50] sm:$0xff] %vm87, %v222
    %236 = vst.msk [vmem:[#allocation7 + $0x58] sm:$0xff] %vm87, %v222
    %237 = vst.msk [vmem:[#allocation7 + $0x60] sm:$0xff] %vm87, %v223
    %238 = vst.msk [vmem:[#allocation7 + $0x68] sm:$0xff] %vm87, %v223
    %239 = vst.msk [vmem:[#allocation7 + $0x70] sm:$0xff] %vm87, %v224
    %240 = vst.msk [vmem:[#allocation7 + $0x78] sm:$0xff] %vm87, %v224
    // Predicated region
    $region18: #{tpu_custom_call.1} parent=1 // pred_check
      _
    $region19: #{tpu_custom_call.1} parent=1 // pred_check_branch
      %242 = sbr.rel (0) target = $region21
    $region20: #{tpu_custom_call.1} parent=1 // pred_region
      %s243 = smul.u32 8, %s6
      %s245 = ssub.s32 2048, 2048
      %246 = vsyncadd [#allocation4], %s245
      %s247 = smul.addr %s243, 2
      %s248 = smul.addr %s247, 128
      %s249 = scalar_lea.hbm %s2, %s248
      %s250 = sshll.u32 [#allocation7], 4
      %s251 = int_to_ptr.vmem [resolvable:$true] %s250
      %256 = dma.vmem_to_hbm [thread:$0]  %s251, 2048, %s249, [#allocation4], 128, 128, 8
    $region21: #{tpu_custom_call.1} parent=1 // pred_fallthru
      _
    // Predicated region
    $region22: #{tpu_custom_call.1} parent=1 // pred_check
      _
    $region23: #{tpu_custom_call.1} parent=1 // pred_check_branch
      %258 = sbr.rel (0) target = $region25
    $region24: #{tpu_custom_call.1} parent=1 // pred_region
      %259 = dma.done [#allocation4], 2048
    $region25: #{tpu_custom_call.1} parent=1 // pred_fallthru
      _
    %260 = vsyncpa [#allocation3], 1
    %261 = vsyncpa [#allocation6], 1
    %262 = vsyncpa [#allocation4], 1

// kernel: tpu_custom_call.1
$region0: #{tpu_custom_call.1}
  #allocation0 [shape = 'u32[]', space=smem, size = 0x4, offset = 0x4, fixed_abs, tag = 'smem constant byte address 0x4 - core index']
  #allocation1 [shape = 'u32[144,128]{1,0:T(1,128)}', space=vmem, size = 0x12000, scoped, tag = 'internal scratch']
  %s0 = inlined_call_operand.hbm [shape: f32[8,16,16], index: 0, kind: input, shape index: {}]
  %s1 = inlined_call_operand.hbm [shape: f32[16,16], index: 1, kind: input, shape index: {}]
  %s2 = inlined_call_operand.hbm [shape: f32[8,16,16], index: 2, kind: output, shape index: {}]
  %s3 = sld [smem:[#allocation0]]
  $region26: #{tpu_custom_call.1} parent=0
    _
  %s5 = ssub.s32 1, %s3
  %s6 = scalar_select 0, %s5, %s3
  $region1: #{tpu_custom_call.1} parent=0
    #allocation2 [shape = 'u8[65536]{0}', space=vmem, size = 0x10000, scoped, tag = 'input window, operand 0, single buffered']
    #allocation3 [shape = 's32[1]{0}', space=sflag, size = 0x4, scoped, tag = 'scoped memory for tpu_custom_call.1']
    #allocation4 [shape = 's32[1]{0}', space=sflag, size = 0x4, scoped, tag = 'scoped memory for tpu_custom_call.1']
    #allocation5 [shape = 'u8[8192]{0}', space=vmem, size = 0x2000, scoped, tag = 'input window, operand 1, single buffered']
    #allocation6 [shape = 's32[1]{0}', space=sflag, size = 0x4, scoped, tag = 'scoped memory for tpu_custom_call.1']
    #allocation7 [shape = 'u8[65536]{0}', space=vmem, size = 0x10000, scoped, tag = 'output window, operand 0, single buffered']
    %7 = vsyncpa [#allocation3], 0
    %8 = vsyncpa [#allocation6], 0
    %9 = vsyncpa [#allocation4], 0
    // Predicated region
    $region2: #{tpu_custom_call.1} parent=1 // pred_check
      _
    $region3: #{tpu_custom_call.1} parent=1 // pred_check_branch
      %11 = sbr.rel (0) target = $region5
    $region4: #{tpu_custom_call.1} parent=1 // pred_region
      %s13 = ssub.s32 2048, 2048
      %14 = vsyncadd [#allocation3], %s13
      %s15 = sshll.u32 [#allocation2], 4
      %s16 = int_to_ptr.vmem [resolvable:$true] %s15
      %21 = dma.hbm_to_vmem [thread:$0]  %s0, 2048, %s16, [#allocation3], 128, 128, 8
    $region5: #{tpu_custom_call.1} parent=1 // pred_fallthru
      _
    // Predicated region
    $region6: #{tpu_custom_call.1} parent=1 // pred_check
      _
    $region7: #{tpu_custom_call.1} parent=1 // pred_check_branch
      %23 = sbr.rel (0) target = $region9
    $region8: #{tpu_custom_call.1} parent=1 // pred_region
      %s25 = ssub.s32 256, 256
      %26 = vsyncadd [#allocation6], %s25
      %s27 = sshll.u32 [#allocation5], 4
      %s28 = int_to_ptr.vmem [resolvable:$true] %s27
      %33 = dma.hbm_to_vmem [thread:$0]  %s1, 256, %s28, [#allocation6], 128, 128, 8
    $region9: #{tpu_custom_call.1} parent=1 // pred_fallthru
      _
    // Predicated region
    $region10: #{tpu_custom_call.1} parent=1 // pred_check
      _
    $region11: #{tpu_custom_call.1} parent=1 // pred_check_branch
      %35 = sbr.rel (0) target = $region13
    $region12: #{tpu_custom_call.1} parent=1 // pred_region
      %36 = dma.done [#allocation3], 2048
    $region13: #{tpu_custom_call.1} parent=1 // pred_fallthru
      _
    // Predicated region
    $region14: #{tpu_custom_call.1} parent=1 // pred_check
      _
    $region15: #{tpu_custom_call.1} parent=1 // pred_check_branch
      %38 = sbr.rel (0) target = $region17
    $region16: #{tpu_custom_call.1} parent=1 // pred_region
      %39 = dma.done [#allocation6], 256
    $region17: #{tpu_custom_call.1} parent=1 // pred_fallthru
      _
    %v40 = vld [vmem:[#allocation2] ss:$2 sm:$0xff]
    %s41 = scalar_lea.vmem [#allocation2], 16
    %v42 = vld [vmem:[%s41] ss:$2 sm:$0xff]
    %s43 = scalar_lea.vmem [#allocation2], 32
    %v44 = vld [vmem:[%s43] ss:$2 sm:$0xff]
    %s45 = scalar_lea.vmem [#allocation2], 48
    %v46 = vld [vmem:[%s45] ss:$2 sm:$0xff]
    %s47 = scalar_lea.vmem [#allocation2], 64
    %v48 = vld [vmem:[%s47] ss:$2 sm:$0xff]
    %s49 = scalar_lea.vmem [#allocation2], 80
    %v50 = vld [vmem:[%s49] ss:$2 sm:$0xff]
    %s51 = scalar_lea.vmem [#allocation2], 96
    %v52 = vld [vmem:[%s51] ss:$2 sm:$0xff]
    %s53 = scalar_lea.vmem [#allocation2], 112
    %v54 = vld [vmem:[%s53] ss:$2 sm:$0xff]
    %s55 = scalar_lea.vmem [#allocation2], 1
    %v56 = vld [vmem:[%s55] ss:$2 sm:$0xff]
    %s57 = scalar_lea.vmem [#allocation2], 17
    %v58 = vld [vmem:[%s57] ss:$2 sm:$0xff]
    %s59 = scalar_lea.vmem [#allocation2], 33
    %v60 = vld [vmem:[%s59] ss:$2 sm:$0xff]
    %s61 = scalar_lea.vmem [#allocation2], 49
    %v62 = vld [vmem:[%s61] ss:$2 sm:$0xff]
    %s63 = scalar_lea.vmem [#allocation2], 65
    %v64 = vld [vmem:[%s63] ss:$2 sm:$0xff]
    %s65 = scalar_lea.vmem [#allocation2], 81
    %v66 = vld [vmem:[%s65] ss:$2 sm:$0xff]
    %s67 = scalar_lea.vmem [#allocation2], 97
    %v68 = vld [vmem:[%s67] ss:$2 sm:$0xff]
    %s69 = scalar_lea.vmem [#allocation2], 113
    %v70 = vld [vmem:[%s69] ss:$2 sm:$0xff]
    %v71 = vadd.f32 %v40, %v56
    %v72 = vadd.f32 %v42, %v58
    %v73 = vadd.f32 %v44, %v60
    %v74 = vadd.f32 %v46, %v62
    %v75 = vadd.f32 %v48, %v64
    %v76 = vadd.f32 %v50, %v66
    %v77 = vadd.f32 %v52, %v68
    %v78 = vadd.f32 %v54, %v70
    %v79 = vld [vmem:[#allocation5] sm:$0xff]
    %v80 = vld [vmem:[#allocation5 + $0x8] sm:$0xff]
    %vm81 = vcmask 130048
    %v83 = vsel %vm81, %v71, 0
    %v86 = vsel %vm81, %v72, 0
    %v89 = vsel %vm81, %v73, 0
    %v92 = vsel %vm81, %v74, 0
    %v95 = vsel %vm81, %v75, 0
    %v98 = vsel %vm81, %v76, 0
    %v101 = vsel %vm81, %v77, 0
    %v104 = vsel %vm81, %v78, 0
    %106 = vmatprep.subr.mxu0 0.0
    %107 = vmatpush1.msra.mxu0 0.0
    %108 = vmatprep.subr.mxu0 0.0
    %109 = vmatpush1.msra.mxu0 0.0
    %110 = vmatprep.subr.mxu0 0.0
    %111 = vmatpush1.msra.mxu0 0.0
    %112 = vmatprep.subr.mxu0 0.0
    %113 = vmatpush1.msra.mxu0 0.0
    %114 = vmatprep.subr.mxu0 0.0
    %115 = vmatpush1.msra.mxu0 0.0
    %116 = vmatprep.subr.mxu0 0.0
    %117 = vmatpush1.msra.mxu0 0.0
    %118 = vmatprep.subr.mxu0 0.0
    %119 = vmatpush1.msra.mxu0 0.0
    %120 = vmatprep.subr.mxu0 0.0
    %121 = vmatpush1.msra.mxu0 0.0
    %122 = vmatprep.subr.mxu0 0.0
    %123 = vmatpush1.msra.mxu0 0.0
    %124 = vmatprep.subr.mxu0 0.0
    %125 = vmatpush1.msra.mxu0 0.0
    %126 = vmatprep.subr.mxu0 0.0
    %127 = vmatpush1.msra.mxu0 0.0
    %128 = vmatprep.subr.mxu0 0.0
    %129 = vmatpush1.msra.mxu0 0.0
    %130 = vmatprep.subr.mxu0 0.0
    %131 = vmatpush1.msra.mxu0 0.0
    %132 = vmatprep.subr.mxu0 0.0
    %133 = vmatpush1.msra.mxu0 0.0
    %134 = vmatprep.subr.mxu0 0.0
    %135 = vmatpush1.msra.mxu0 %v80
    %136 = vmatprep.subr.mxu0 0.0
    %137 = vmatpush1.msra.mxu0 %v79
    %138 = vmatprep.subr.mxu0 0.0
    %139 = vmatpush2.msra.mxu0 0.0
    %140 = vmatprep.subr.mxu0 0.0
    %141 = vmatpush2.msra.mxu0 0.0
    %142 = vmatprep.subr.mxu0 0.0
    %143 = vmatpush2.msra.mxu0 0.0
    %144 = vmatprep.subr.mxu0 0.0
    %145 = vmatpush2.msra.mxu0 0.0
    %146 = vmatprep.subr.mxu0 0.0
    %147 = vmatpush2.msra.mxu0 0.0
    %148 = vmatprep.subr.mxu0 0.0
    %149 = vmatpush2.msra.mxu0 0.0
    %150 = vmatprep.subr.mxu0 0.0
    %151 = vmatpush2.msra.mxu0 0.0
    %152 = vmatprep.subr.mxu0 0.0
    %153 = vmatpush2.msra.mxu0 0.0
    %154 = vmatprep.subr.mxu0 0.0
    %155 = vmatpush2.msra.mxu0 0.0
    %156 = vmatprep.subr.mxu0 0.0
    %157 = vmatpush2.msra.mxu0 0.0
    %158 = vmatprep.subr.mxu0 0.0
    %159 = vmatpush2.msra.mxu0 0.0
    %160 = vmatprep.subr.mxu0 0.0
    %161 = vmatpush2.msra.mxu0 0.0
    %162 = vmatprep.subr.mxu0 0.0
    %163 = vmatpush2.msra.mxu0 0.0
    %164 = vmatprep.subr.mxu0 0.0
    %165 = vmatpush2.msra.mxu0 0.0
    %166 = vmatprep.subr.mxu0 0.0
    %167 = vmatpush2.msra.mxu0 0.0
    %168 = vmatprep.subr.mxu0 0.0
    %169 = vmatpush2.msra.mxu0 0.0
    %170 = vmatprep.mubr.f32.mxu0 0.0
    %171 = vmatmul.mubr.f32.gmra.mxu0 %v83
    %v172 = vpop.f32.mrf.mxu0
    %v173 = vadd.f32 0.0, %v172
    %v174 = vpop.f32.mrf.mxu0
    %175 = vmatprep.mubr.f32.mxu0 0.0
    %176 = vmatmul.mubr.f32.gmra.mxu0 %v86
    %v177 = vpop.f32.mrf.mxu0
    %v178 = vadd.f32 0.0, %v177
    %v179 = vpop.f32.mrf.mxu0
    %180 = vmatprep.mubr.f32.mxu0 0.0
    %181 = vmatmul.mubr.f32.gmra.mxu0 %v89
    %v182 = vpop.f32.mrf.mxu0
    %v183 = vadd.f32 0.0, %v182
    %v184 = vpop.f32.mrf.mxu0
    %185 = vmatprep.mubr.f32.mxu0 0.0
    %186 = vmatmul.mubr.f32.gmra.mxu0 %v92
    %v187 = vpop.f32.mrf.mxu0
    %v188 = vadd.f32 0.0, %v187
    %v189 = vpop.f32.mrf.mxu0
    %190 = vmatprep.mubr.f32.mxu0 0.0
    %191 = vmatmul.mubr.f32.gmra.mxu0 %v95
    %v192 = vpop.f32.mrf.mxu0
    %v193 = vadd.f32 0.0, %v192
    %v194 = vpop.f32.mrf.mxu0
    %195 = vmatprep.mubr.f32.mxu0 0.0
    %196 = vmatmul.mubr.f32.gmra.mxu0 %v98
    %v197 = vpop.f32.mrf.mxu0
    %v198 = vadd.f32 0.0, %v197
    %v199 = vpop.f32.mrf.mxu0
    %200 = vmatprep.mubr.f32.mxu0 0.0
    %201 = vmatmul.mubr.f32.gmra.mxu0 %v101
    %v202 = vpop.f32.mrf.mxu0
    %v203 = vadd.f32 0.0, %v202
    %v204 = vpop.f32.mrf.mxu0
    %205 = vmatprep.mubr.f32.mxu0 0.0
    %206 = vmatmul.mubr.f32.gmra.mxu0 %v104
    %v207 = vpop.f32.mrf.mxu0
    %v208 = vadd.f32 0.0, %v207
    %v209 = vpop.f32.mrf.mxu0
    %210 = vdwg.mxu0
    %v211 = vmul.f32 %v173, 0.25
    %v212 = vmul.f32 %v178, 0.25
    %v213 = vmul.f32 %v183, 0.25
    %v214 = vmul.f32 %v188, 0.25
    %v215 = vmul.f32 %v193, 0.25
    %v216 = vmul.f32 %v198, 0.25
    %v217 = vmul.f32 %v203, 0.25
    %v218 = vmul.f32 %v208, 0.25
    %219 = vst.msk [vmem:[#allocation7] sm:$0xff] %vm81, %v211
    %220 = vst.msk [vmem:[#allocation7 + $0x8] sm:$0xff] %vm81, %v211
    %221 = vst.msk [vmem:[#allocation7 + $0x10] sm:$0xff] %vm81, %v212
    %222 = vst.msk [vmem:[#allocation7 + $0x18] sm:$0xff] %vm81, %v212
    %223 = vst.msk [vmem:[#allocation7 + $0x20] sm:$0xff] %vm81, %v213
    %224 = vst.msk [vmem:[#allocation7 + $0x28] sm:$0xff] %vm81, %v213
    %225 = vst.msk [vmem:[#allocation7 + $0x30] sm:$0xff] %vm81, %v214
    %226 = vst.msk [vmem:[#allocation7 + $0x38] sm:$0xff] %vm81, %v214
    %227 = vst.msk [vmem:[#allocation7 + $0x40] sm:$0xff] %vm81, %v215
    %228 = vst.msk [vmem:[#allocation7 + $0x48] sm:$0xff] %vm81, %v215
    %229 = vst.msk [vmem:[#allocation7 + $0x50] sm:$0xff] %vm81, %v216
    %230 = vst.msk [vmem:[#allocation7 + $0x58] sm:$0xff] %vm81, %v216
    %231 = vst.msk [vmem:[#allocation7 + $0x60] sm:$0xff] %vm81, %v217
    %232 = vst.msk [vmem:[#allocation7 + $0x68] sm:$0xff] %vm81, %v217
    %233 = vst.msk [vmem:[#allocation7 + $0x70] sm:$0xff] %vm81, %v218
    %234 = vst.msk [vmem:[#allocation7 + $0x78] sm:$0xff] %vm81, %v218
    // Predicated region
    $region18: #{tpu_custom_call.1} parent=1 // pred_check
      _
    $region19: #{tpu_custom_call.1} parent=1 // pred_check_branch
      %236 = sbr.rel (0) target = $region21
    $region20: #{tpu_custom_call.1} parent=1 // pred_region
      %s238 = ssub.s32 2048, 2048
      %239 = vsyncadd [#allocation4], %s238
      %s240 = sshll.u32 [#allocation7], 4
      %s241 = int_to_ptr.vmem [resolvable:$true] %s240
      %246 = dma.vmem_to_hbm [thread:$0]  %s241, 2048, %s2, [#allocation4], 128, 128, 8
    $region21: #{tpu_custom_call.1} parent=1 // pred_fallthru
      _
    // Predicated region
    $region22: #{tpu_custom_call.1} parent=1 // pred_check
      _
    $region23: #{tpu_custom_call.1} parent=1 // pred_check_branch
      %248 = sbr.rel (0) target = $region25
    $region24: #{tpu_custom_call.1} parent=1 // pred_region
      %249 = dma.done [#allocation4], 2048
    $region25: #{tpu_custom_call.1} parent=1 // pred_fallthru
      _
    %250 = vsyncpa [#allocation3], 1
    %251 = vsyncpa [#allocation6], 1
    %252 = vsyncpa [#allocation4], 1

// kernel: tpu_custom_call.1
$region0: #{tpu_custom_call.1}
  #allocation0 [shape = 'u32[]', space=smem, size = 0x4, offset = 0x4, fixed_abs, tag = 'smem constant byte address 0x4 - core index']
  #allocation1 [shape = 'u32[144,128]{1,0:T(1,128)}', space=vmem, size = 0x12000, scoped, tag = 'internal scratch']
  %s0 = inlined_call_operand.hbm [shape: f32[8,16,16], index: 0, kind: input, shape index: {}]
  %s1 = inlined_call_operand.hbm [shape: f32[16,16], index: 1, kind: input, shape index: {}]
  %s2 = inlined_call_operand.hbm [shape: f32[8,16,16], index: 2, kind: output, shape index: {}]
  %s3 = sld [smem:[#allocation0]]
  $region26: #{tpu_custom_call.1} parent=0
    _
  %s5 = ssub.s32 1, %s3
  %s6 = scalar_select 0, %s5, %s3
  $region1: #{tpu_custom_call.1} parent=0
    #allocation2 [shape = 'u8[65536]{0}', space=vmem, size = 0x10000, scoped, tag = 'input window, operand 0, single buffered']
    #allocation3 [shape = 's32[1]{0}', space=sflag, size = 0x4, scoped, tag = 'scoped memory for tpu_custom_call.1']
    #allocation4 [shape = 's32[1]{0}', space=sflag, size = 0x4, scoped, tag = 'scoped memory for tpu_custom_call.1']
    #allocation5 [shape = 'u8[8192]{0}', space=vmem, size = 0x2000, scoped, tag = 'input window, operand 1, single buffered']
    #allocation6 [shape = 's32[1]{0}', space=sflag, size = 0x4, scoped, tag = 'scoped memory for tpu_custom_call.1']
    #allocation7 [shape = 'u8[65536]{0}', space=vmem, size = 0x10000, scoped, tag = 'output window, operand 0, single buffered']
    %7 = vsyncpa [#allocation3], 0
    %8 = vsyncpa [#allocation6], 0
    %9 = vsyncpa [#allocation4], 0
    // Predicated region
    $region2: #{tpu_custom_call.1} parent=1 // pred_check
      _
    $region3: #{tpu_custom_call.1} parent=1 // pred_check_branch
      %11 = sbr.rel (0) target = $region5
    $region4: #{tpu_custom_call.1} parent=1 // pred_region
      %s13 = ssub.s32 2048, 2048
      %14 = vsyncadd [#allocation3], %s13
      %s15 = sshll.u32 [#allocation2], 4
      %s16 = int_to_ptr.vmem [resolvable:$true] %s15
      %21 = dma.hbm_to_vmem [thread:$0]  %s0, 2048, %s16, [#allocation3], 128, 128, 8
    $region5: #{tpu_custom_call.1} parent=1 // pred_fallthru
      _
    // Predicated region
    $region6: #{tpu_custom_call.1} parent=1 // pred_check
      _
    $region7: #{tpu_custom_call.1} parent=1 // pred_check_branch
      %23 = sbr.rel (0) target = $region9
    $region8: #{tpu_custom_call.1} parent=1 // pred_region
      %s25 = ssub.s32 256, 256
      %26 = vsyncadd [#allocation6], %s25
      %s27 = sshll.u32 [#allocation5], 4
      %s28 = int_to_ptr.vmem [resolvable:$true] %s27
      %33 = dma.hbm_to_vmem [thread:$0]  %s1, 256, %s28, [#allocation6], 128, 128, 8
    $region9: #{tpu_custom_call.1} parent=1 // pred_fallthru
      _
    // Predicated region
    $region10: #{tpu_custom_call.1} parent=1 // pred_check
      _
    $region11: #{tpu_custom_call.1} parent=1 // pred_check_branch
      %35 = sbr.rel (0) target = $region13
    $region12: #{tpu_custom_call.1} parent=1 // pred_region
      %36 = dma.done [#allocation3], 2048
    $region13: #{tpu_custom_call.1} parent=1 // pred_fallthru
      _
    // Predicated region
    $region14: #{tpu_custom_call.1} parent=1 // pred_check
      _
    $region15: #{tpu_custom_call.1} parent=1 // pred_check_branch
      %38 = sbr.rel (0) target = $region17
    $region16: #{tpu_custom_call.1} parent=1 // pred_region
      %39 = dma.done [#allocation6], 256
    $region17: #{tpu_custom_call.1} parent=1 // pred_fallthru
      _
    %v40 = vld [vmem:[#allocation2] ss:$2 sm:$0xff]
    %s41 = scalar_lea.vmem [#allocation2], 16
    %v42 = vld [vmem:[%s41] ss:$2 sm:$0xff]
    %s43 = scalar_lea.vmem [#allocation2], 32
    %v44 = vld [vmem:[%s43] ss:$2 sm:$0xff]
    %s45 = scalar_lea.vmem [#allocation2], 48
    %v46 = vld [vmem:[%s45] ss:$2 sm:$0xff]
    %s47 = scalar_lea.vmem [#allocation2], 64
    %v48 = vld [vmem:[%s47] ss:$2 sm:$0xff]
    %s49 = scalar_lea.vmem [#allocation2], 80
    %v50 = vld [vmem:[%s49] ss:$2 sm:$0xff]
    %s51 = scalar_lea.vmem [#allocation2], 96
    %v52 = vld [vmem:[%s51] ss:$2 sm:$0xff]
    %s53 = scalar_lea.vmem [#allocation2], 112
    %v54 = vld [vmem:[%s53] ss:$2 sm:$0xff]
    %s55 = scalar_lea.vmem [#allocation2], 1
    %v56 = vld [vmem:[%s55] ss:$2 sm:$0xff]
    %s57 = scalar_lea.vmem [#allocation2], 17
    %v58 = vld [vmem:[%s57] ss:$2 sm:$0xff]
    %s59 = scalar_lea.vmem [#allocation2], 33
    %v60 = vld [vmem:[%s59] ss:$2 sm:$0xff]
    %s61 = scalar_lea.vmem [#allocation2], 49
    %v62 = vld [vmem:[%s61] ss:$2 sm:$0xff]
    %s63 = scalar_lea.vmem [#allocation2], 65
    %v64 = vld [vmem:[%s63] ss:$2 sm:$0xff]
    %s65 = scalar_lea.vmem [#allocation2], 81
    %v66 = vld [vmem:[%s65] ss:$2 sm:$0xff]
    %s67 = scalar_lea.vmem [#allocation2], 97
    %v68 = vld [vmem:[%s67] ss:$2 sm:$0xff]
    %s69 = scalar_lea.vmem [#allocation2], 113
    %v70 = vld [vmem:[%s69] ss:$2 sm:$0xff]
    %v71 = vadd.f32 %v40, %v56
    %v72 = vadd.f32 %v42, %v58
    %v73 = vadd.f32 %v44, %v60
    %v74 = vadd.f32 %v46, %v62
    %v75 = vadd.f32 %v48, %v64
    %v76 = vadd.f32 %v50, %v66
    %v77 = vadd.f32 %v52, %v68
    %v78 = vadd.f32 %v54, %v70
    %v79 = vld [vmem:[#allocation5] sm:$0xff]
    %v80 = vld [vmem:[#allocation5 + $0x8] sm:$0xff]
    %vm81 = vcmask 130048
    %v83 = vsel %vm81, %v71, 0
    %v86 = vsel %vm81, %v72, 0
    %v89 = vsel %vm81, %v73, 0
    %v92 = vsel %vm81, %v74, 0
    %v95 = vsel %vm81, %v75, 0
    %v98 = vsel %vm81, %v76, 0
    %v101 = vsel %vm81, %v77, 0
    %v104 = vsel %vm81, %v78, 0
    %106 = vmatprep.subr.mxu0 0.0
    %107 = vmatpush1.msra.mxu0 0.0
    %108 = vmatprep.subr.mxu0 0.0
    %109 = vmatpush1.msra.mxu0 0.0
    %110 = vmatprep.subr.mxu0 0.0
    %111 = vmatpush1.msra.mxu0 0.0
    %112 = vmatprep.subr.mxu0 0.0
    %113 = vmatpush1.msra.mxu0 0.0
    %114 = vmatprep.subr.mxu0 0.0
    %115 = vmatpush1.msra.mxu0 0.0
    %116 = vmatprep.subr.mxu0 0.0
    %117 = vmatpush1.msra.mxu0 0.0
    %118 = vmatprep.subr.mxu0 0.0
    %119 = vmatpush1.msra.mxu0 0.0
    %120 = vmatprep.subr.mxu0 0.0
    %121 = vmatpush1.msra.mxu0 0.0
    %122 = vmatprep.subr.mxu0 0.0
    %123 = vmatpush1.msra.mxu0 0.0
    %124 = vmatprep.subr.mxu0 0.0
    %125 = vmatpush1.msra.mxu0 0.0
    %126 = vmatprep.subr.mxu0 0.0
    %127 = vmatpush1.msra.mxu0 0.0
    %128 = vmatprep.subr.mxu0 0.0
    %129 = vmatpush1.msra.mxu0 0.0
    %130 = vmatprep.subr.mxu0 0.0
    %131 = vmatpush1.msra.mxu0 0.0
    %132 = vmatprep.subr.mxu0 0.0
    %133 = vmatpush1.msra.mxu0 0.0
    %134 = vmatprep.subr.mxu0 0.0
    %135 = vmatpush1.msra.mxu0 %v80
    %136 = vmatprep.subr.mxu0 0.0
    %137 = vmatpush1.msra.mxu0 %v79
    %138 = vmatprep.subr.mxu0 0.0
    %139 = vmatpush2.msra.mxu0 0.0
    %140 = vmatprep.subr.mxu0 0.0
    %141 = vmatpush2.msra.mxu0 0.0
    %142 = vmatprep.subr.mxu0 0.0
    %143 = vmatpush2.msra.mxu0 0.0
    %144 = vmatprep.subr.mxu0 0.0
    %145 = vmatpush2.msra.mxu0 0.0
    %146 = vmatprep.subr.mxu0 0.0
    %147 = vmatpush2.msra.mxu0 0.0
    %148 = vmatprep.subr.mxu0 0.0
    %149 = vmatpush2.msra.mxu0 0.0
    %150 = vmatprep.subr.mxu0 0.0
    %151 = vmatpush2.msra.mxu0 0.0
    %152 = vmatprep.subr.mxu0 0.0
    %153 = vmatpush2.msra.mxu0 0.0
    %154 = vmatprep.subr.mxu0 0.0
    %155 = vmatpush2.msra.mxu0 0.0
    %156 = vmatprep.subr.mxu0 0.0
    %157 = vmatpush2.msra.mxu0 0.0
    %158 = vmatprep.subr.mxu0 0.0
    %159 = vmatpush2.msra.mxu0 0.0
    %160 = vmatprep.subr.mxu0 0.0
    %161 = vmatpush2.msra.mxu0 0.0
    %162 = vmatprep.subr.mxu0 0.0
    %163 = vmatpush2.msra.mxu0 0.0
    %164 = vmatprep.subr.mxu0 0.0
    %165 = vmatpush2.msra.mxu0 0.0
    %166 = vmatprep.subr.mxu0 0.0
    %167 = vmatpush2.msra.mxu0 0.0
    %168 = vmatprep.subr.mxu0 0.0
    %169 = vmatpush2.msra.mxu0 0.0
    %170 = vmatprep.mubr.f32.mxu0 0.0
    %171 = vmatmul.mubr.f32.gmra.mxu0 %v83
    %v172 = vpop.f32.mrf.mxu0
    %v173 = vadd.f32 0.0, %v172
    %v174 = vpop.f32.mrf.mxu0
    %175 = vmatprep.mubr.f32.mxu0 0.0
    %176 = vmatmul.mubr.f32.gmra.mxu0 %v86
    %v177 = vpop.f32.mrf.mxu0
    %v178 = vadd.f32 0.0, %v177
    %v179 = vpop.f32.mrf.mxu0
    %180 = vmatprep.mubr.f32.mxu0 0.0
    %181 = vmatmul.mubr.f32.gmra.mxu0 %v89
    %v182 = vpop.f32.mrf.mxu0
    %v183 = vadd.f32 0.0, %v182
    %v184 = vpop.f32.mrf.mxu0
    %185 = vmatprep.mubr.f32.mxu0 0.0
    %186 = vmatmul.mubr.f32.gmra.mxu0 %v92
    %v187 = vpop.f32.mrf.mxu0
    %v188 = vadd.f32 0.0, %v187
    %v189 = vpop.f32.mrf.mxu0
    %190 = vmatprep.mubr.f32.mxu0 0.0
    %191 = vmatmul.mubr.f32.gmra.mxu0 %v95
    %v192 = vpop.f32.mrf.mxu0
    %v193 = vadd.f32 0.0, %v192
    %v194 = vpop.f32.mrf.mxu0
    %195 = vmatprep.mubr.f32.mxu0 0.0
    %196 = vmatmul.mubr.f32.gmra.mxu0 %v98
    %v197 = vpop.f32.mrf.mxu0
    %v198 = vadd.f32 0.0, %v197
    %v199 = vpop.f32.mrf.mxu0
    %200 = vmatprep.mubr.f32.mxu0 0.0
    %201 = vmatmul.mubr.f32.gmra.mxu0 %v101
    %v202 = vpop.f32.mrf.mxu0
    %v203 = vadd.f32 0.0, %v202
    %v204 = vpop.f32.mrf.mxu0
    %205 = vmatprep.mubr.f32.mxu0 0.0
    %206 = vmatmul.mubr.f32.gmra.mxu0 %v104
    %v207 = vpop.f32.mrf.mxu0
    %v208 = vadd.f32 0.0, %v207
    %v209 = vpop.f32.mrf.mxu0
    %210 = vdwg.mxu0
    %v211 = vmul.f32 %v173, 0.25
    %v212 = vmul.f32 %v178, 0.25
    %v213 = vmul.f32 %v183, 0.25
    %v214 = vmul.f32 %v188, 0.25
    %v215 = vmul.f32 %v193, 0.25
    %v216 = vmul.f32 %v198, 0.25
    %v217 = vmul.f32 %v203, 0.25
    %v218 = vmul.f32 %v208, 0.25
    %219 = vst.msk [vmem:[#allocation7] sm:$0xff] %vm81, %v211
    %220 = vst.msk [vmem:[#allocation7 + $0x8] sm:$0xff] %vm81, %v211
    %221 = vst.msk [vmem:[#allocation7 + $0x10] sm:$0xff] %vm81, %v212
    %222 = vst.msk [vmem:[#allocation7 + $0x18] sm:$0xff] %vm81, %v212
    %223 = vst.msk [vmem:[#allocation7 + $0x20] sm:$0xff] %vm81, %v213
    %224 = vst.msk [vmem:[#allocation7 + $0x28] sm:$0xff] %vm81, %v213
    %225 = vst.msk [vmem:[#allocation7 + $0x30] sm:$0xff] %vm81, %v214
    %226 = vst.msk [vmem:[#allocation7 + $0x38] sm:$0xff] %vm81, %v214
    %227 = vst.msk [vmem:[#allocation7 + $0x40] sm:$0xff] %vm81, %v215
    %228 = vst.msk [vmem:[#allocation7 + $0x48] sm:$0xff] %vm81, %v215
    %229 = vst.msk [vmem:[#allocation7 + $0x50] sm:$0xff] %vm81, %v216
    %230 = vst.msk [vmem:[#allocation7 + $0x58] sm:$0xff] %vm81, %v216
    %231 = vst.msk [vmem:[#allocation7 + $0x60] sm:$0xff] %vm81, %v217
    %232 = vst.msk [vmem:[#allocation7 + $0x68] sm:$0xff] %vm81, %v217
    %233 = vst.msk [vmem:[#allocation7 + $0x70] sm:$0xff] %vm81, %v218
    %234 = vst.msk [vmem:[#allocation7 + $0x78] sm:$0xff] %vm81, %v218
    // Predicated region
    $region18: #{tpu_custom_call.1} parent=1 // pred_check
      _
    $region19: #{tpu_custom_call.1} parent=1 // pred_check_branch
      %236 = sbr.rel (0) target = $region21
    $region20: #{tpu_custom_call.1} parent=1 // pred_region
      %s238 = ssub.s32 2048, 2048
      %239 = vsyncadd [#allocation4], %s238
      %s240 = sshll.u32 [#allocation7], 4
      %s241 = int_to_ptr.vmem [resolvable:$true] %s240
      %246 = dma.vmem_to_hbm [thread:$0]  %s241, 2048, %s2, [#allocation4], 128, 128, 8
    $region21: #{tpu_custom_call.1} parent=1 // pred_fallthru
      _
    // Predicated region
    $region22: #{tpu_custom_call.1} parent=1 // pred_check
      _
    $region23: #{tpu_custom_call.1} parent=1 // pred_check_branch
      %248 = sbr.rel (0) target = $region25
    $region24: #{tpu_custom_call.1} parent=1 // pred_region
      %249 = dma.done [#allocation4], 2048
    $region25: #{tpu_custom_call.1} parent=1 // pred_fallthru
      _
    %250 = vsyncpa [#allocation3], 1
    %251 = vsyncpa [#allocation6], 1
    %252 = vsyncpa [#allocation4], 1

// kernel: tpu_custom_call.1
$region0: #{tpu_custom_call.1}
  #allocation0 [shape = 'u32[]', space=smem, size = 0x4, offset = 0x4, fixed_abs, tag = 'smem constant byte address 0x4 - core index']
  #allocation1 [shape = 'u32[144,128]{1,0:T(1,128)}', space=vmem, size = 0x12000, scoped, tag = 'internal scratch']
  %s0 = inlined_call_operand.hbm [shape: f32[8,16,16], index: 0, kind: input, shape index: {}]
  %s1 = inlined_call_operand.hbm [shape: f32[16,16], index: 1, kind: input, shape index: {}]
  %s2 = inlined_call_operand.hbm [shape: f32[16,16], index: 2, kind: input, shape index: {}]
  %s3 = inlined_call_operand.hbm [shape: f32[8,16,16], index: 3, kind: output, shape index: {}]
  %s4 = sld [smem:[#allocation0]]
  $region57: #{tpu_custom_call.1} parent=0
    _
  %s6 = ssub.s32 1, %s4
  %s7 = scalar_select 0, %s6, %s4
  $region1: #{tpu_custom_call.1} parent=0
    #allocation2 [shape = 'u8[16384]{0}', space=vmem, size = 0x4000, scoped, tag = 'input window, operand 0']
    #allocation3 [shape = 's32[2]{0}', space=sflag, size = 0x8, scoped, tag = 'scoped memory for tpu_custom_call.1']
    #allocation4 [shape = 's32[2]{0}', space=sflag, size = 0x8, scoped, tag = 'scoped memory for tpu_custom_call.1']
    #allocation5 [shape = 'u8[8192]{0}', space=vmem, size = 0x2000, scoped, tag = 'input window, operand 1, single buffered']
    #allocation6 [shape = 's32[1]{0}', space=sflag, size = 0x4, scoped, tag = 'scoped memory for tpu_custom_call.1']
    #allocation7 [shape = 'u8[8192]{0}', space=vmem, size = 0x2000, scoped, tag = 'input window, operand 2, single buffered']
    #allocation8 [shape = 'u8[16384]{0}', space=vmem, size = 0x4000, scoped, tag = 'output window, operand 0']
    %8 = vsyncpa [#allocation3], 0
    %s9 = scalar_lea.sflag [#allocation3], 1
    %10 = vsyncpa %s9, 0
    %11 = vsyncpa [#allocation6], 0
    %12 = vsyncpa [#allocation4], 0
    %s13 = scalar_lea.sflag [#allocation4], 1
    %14 = vsyncpa %s13, 0
    loop: start=0, step=1, limit=10
    $region2: #{tpu_custom_call.1} parent=1 // loop_pre_header
      _
    $region3: #{tpu_custom_call.1} parent=1 // loop_header
      %s16 = sphi 0, %s20
      %p17 = scmp.ge.s32.totalorder %s16, 10
      %s26 = sphi 0, %s28
      %s29 = sphi 0, %s26
      %s30 = sphi 0, %s29
      %s46 = sphi 0, %s30
      %s50 = sphi 0, %s50
      %s52 = sphi 0, %s50
      %s53 = sphi 0, %s52
      %s67 = sphi 0, %s53
      %s71 = sphi 0, %s71
      %s73 = sphi 0, %s71
      %s74 = sphi 0, %s73
      %s88 = sphi 0, %s74
      %s94 = sphi 0, %s96
      %s97 = sphi 0, %s94
      %s98 = sphi 0, %s97
      %s114 = sphi 0, %s98
    $region4: #{tpu_custom_call.1} parent=1 // loop_header_branch
      %19 = sbr.rel (%p17) target = $region8
    $region5: #{tpu_custom_call.1} parent=1 // loop_body
      %s21 = ssub.s32 %s16, 1
      %s22 = ssub.s32 %s16, 2
      %s23 = sadd.s32 %s16, 1
      %s24 = ssub.s32 %s16, %s23
      %p25 = scmp.eq.s32.totalorder %s24, 0
      %s27 = sadd.s32 %s26, 1
      %s28 = scalar_select %p25, %s26, %s27
      %p31 = pneg %p25
      %p32 = scmp.eq.s32.totalorder %s16, 7
      %p33 = por %p31, %p32
      %p34 = scmp.ne.s32.totalorder %s26, %s29
      %p35 = scmp.eq.s32.totalorder %s16, 0
      %p36 = por %p34, %p35
      %p37 = scmp.ne.s32.totalorder %s26, %s29
      %p38 = scmp.eq.s32.totalorder %s21, 7
      %p39 = por %p37, %p38
      %p40 = scmp.ne.s32.totalorder %s29, %s30
      %p41 = scmp.eq.s32.totalorder %s21, 0
      %p42 = por %p40, %p41
      %p43 = scmp.ne.s32.totalorder %s29, %s30
      %p44 = scmp.eq.s32.totalorder %s22, 7
      %p45 = por %p43, %p44
      %p47 = scmp.ne.s32.totalorder %s30, %s46
      %p48 = scmp.eq.s32.totalorder %s22, 0
      %p49 = por %p47, %p48
      %s51 = sadd.s32 %s50, 1
      %p54 = scmp.eq.s32.totalorder %s16, 7
      %p55 = scmp.ne.s32.totalorder %s50, %s52
      %p56 = scmp.eq.s32.totalorder %s16, 0
      %p57 = por %p55, %p56
      %p58 = scmp.ne.s32.totalorder %s50, %s52
      %p59 = scmp.eq.s32.totalorder %s21, 7
      %p60 = por %p58, %p59
      %p61 = scmp.ne.s32.totalorder %s52, %s53
      %p62 = scmp.eq.s32.totalorder %s21, 0
      %p63 = por %p61, %p62
      %p64 = scmp.ne.s32.totalorder %s52, %s53
      %p65 = scmp.eq.s32.totalorder %s22, 7
      %p66 = por %p64, %p65
      %p68 = scmp.ne.s32.totalorder %s53, %s67
      %p69 = scmp.eq.s32.totalorder %s22, 0
      %p70 = por %p68, %p69
      %s72 = sadd.s32 %s71, 1
      %p75 = scmp.eq.s32.totalorder %s16, 7
      %p76 = scmp.ne.s32.totalorder %s71, %s73
      %p77 = scmp.eq.s32.totalorder %s16, 0
      %p78 = por %p76, %p77
      %p79 = scmp.ne.s32.totalorder %s71, %s73
      %p80 = scmp.eq.s32.totalorder %s21, 7
      %p81 = por %p79, %p80
      %p82 = scmp.ne.s32.totalorder %s73, %s74
      %p83 = scmp.eq.s32.totalorder %s21, 0
      %p84 = por %p82, %p83
      %p85 = scmp.ne.s32.totalorder %s73, %s74
      %p86 = scmp.eq.s32.totalorder %s22, 7
      %p87 = por %p85, %p86
      %p89 = scmp.ne.s32.totalorder %s74, %s88
      %p90 = scmp.eq.s32.totalorder %s22, 0
      %p91 = por %p89, %p90
      %s92 = ssub.s32 %s16, %s23
      %p93 = scmp.eq.s32.totalorder %s92, 0
      %s95 = sadd.s32 %s94, 1
      %s96 = scalar_select %p93, %s94, %s95
      %p99 = pneg %p93
      %p100 = scmp.eq.s32.totalorder %s16, 7
      %p101 = por %p99, %p100
      %p102 = scmp.ne.s32.totalorder %s94, %s97
      %p103 = scmp.eq.s32.totalorder %s16, 0
      %p104 = por %p102, %p103
      %p105 = scmp.ne.s32.totalorder %s94, %s97
      %p106 = scmp.eq.s32.totalorder %s21, 7
      %p107 = por %p105, %p106
      %p108 = scmp.ne.s32.totalorder %s97, %s98
      %p109 = scmp.eq.s32.totalorder %s21, 0
      %p110 = por %p108, %p109
      %p111 = scmp.ne.s32.totalorder %s97, %s98
      %p112 = scmp.eq.s32.totalorder %s22, 7
      %p113 = por %p111, %p112
      %p115 = scmp.ne.s32.totalorder %s98, %s114
      %p116 = scmp.eq.s32.totalorder %s22, 0
      %p117 = por %p115, %p116
      %p118 = scmp.le.s32.totalorder 1, %s16
      %p119 = scmp.lt.s32.totalorder %s16, 9
      %p120 = pnand %p118, %p119
      %p121 = pneg %p120
      // Predicated region
      $region9: #{tpu_custom_call.1} parent=5 // pred_check
        _
      $region10: #{tpu_custom_call.1} parent=5 // pred_check_branch
        %123 = sbr.rel (%p120) target = $region12
      $region11: #{tpu_custom_call.1} parent=5 // pred_region
        %s124 = ssub.s32 %s16, 1
        // Predicated region
        $region13: #{tpu_custom_call.1} parent=11 // pred_check
          %p125 = pneg %p63
        $region14: #{tpu_custom_call.1} parent=11 // pred_check_branch
          %127 = sbr.rel (%p125) target = $region16
        $region15: #{tpu_custom_call.1} parent=11 // pred_region
          %s129 = ssub.s32 256, 256
          %130 = vsyncadd [#allocation6], %s129
          %s131 = sshll.u32 [#allocation5], 4
          %s132 = int_to_ptr.vmem [resolvable:$true] %s131
          %137 = dma.hbm_to_vmem [thread:$0]  %s1, 256, %s132, [#allocation6], 128, 128, 8
        $region16: #{tpu_custom_call.1} parent=11 // pred_fallthru
          _
        // Predicated region
        $region17: #{tpu_custom_call.1} parent=11 // pred_check
          %p138 = pneg %p84
        $region18: #{tpu_custom_call.1} parent=11 // pred_check_branch
          %140 = sbr.rel (%p138) target = $region20
        $region19: #{tpu_custom_call.1} parent=11 // pred_region
          %s142 = ssub.s32 256, 256
          %143 = vsyncadd [#allocation6], %s142
          %s144 = sshll.u32 [#allocation7], 4
          %s145 = int_to_ptr.vmem [resolvable:$true] %s144
          %150 = dma.hbm_to_vmem [thread:$0]  %s2, 256, %s145, [#allocation6], 128, 128, 8
        $region20: #{tpu_custom_call.1} parent=11 // pred_fallthru
          _
      $region12: #{tpu_custom_call.1} parent=5 // pred_fallthru
        _
      %p151 = scmp.lt.s32.totalorder %s16, 8
      // Predicated region
      $region21: #{tpu_custom_call.1} parent=5 // pred_check
        %p152 = pneg %p151
      $region22: #{tpu_custom_call.1} parent=5 // pred_check_branch
        %154 = sbr.rel (%p152) target = $region24
      $region23: #{tpu_custom_call.1} parent=5 // pred_region
        // Predicated region
        $region25: #{tpu_custom_call.1} parent=23 // pred_check
          %p155 = pneg %p36
        $region26: #{tpu_custom_call.1} parent=23 // pred_check_branch
          %157 = sbr.rel (%p155) target = $region28
        $region27: #{tpu_custom_call.1} parent=23 // pred_region
          %s158 = sand.u32 %s26, 1
          %s159 = scalar_lea.sflag [#allocation3], %s158
          %s160 = sand.u32 %s26, 1
          %s161 = smul.addr %s160, 16
          %s162 = scalar_lea.vmem [#allocation2], %s161
          %s164 = ssub.s32 256, 256
          %165 = vsyncadd %s159, %s164
          %s166 = smul.addr %s16, 2
          %s167 = smul.addr %s166, 128
          %s168 = scalar_lea.hbm %s0, %s167
          %s169 = sshll.u32 %s162, 4
          %s170 = int_to_ptr.vmem [resolvable:$true] %s169
          %175 = dma.hbm_to_vmem [thread:$0]  %s168, 256, %s170, %s159, 128, 128, 8
        $region28: #{tpu_custom_call.1} parent=23 // pred_fallthru
          _
      $region24: #{tpu_custom_call.1} parent=5 // pred_fallthru
        _
      %p176 = scmp.le.s32.totalorder 1, %s16
      %p177 = scmp.lt.s32.totalorder %s16, 9
      %p178 = pnand %p176, %p177
      %p179 = pneg %p178
      // Predicated region
      $region29: #{tpu_custom_call.1} parent=5 // pred_check
        _
      $region30: #{tpu_custom_call.1} parent=5 // pred_check_branch
        %181 = sbr.rel (%p178) target = $region32
      $region31: #{tpu_custom_call.1} parent=5 // pred_region
        %s182 = ssub.s32 %s16, 1
        %s183 = sand.u32 %s29, 1
        %s184 = scalar_lea.sflag [#allocation3], %s183
        %s185 = sand.u32 %s29, 1
        %s186 = smul.addr %s185, 16
        %s187 = scalar_lea.vmem [#allocation2], %s186
        // Predicated region
        $region33: #{tpu_custom_call.1} parent=31 // pred_check
          %p188 = pneg %p42
        $region34: #{tpu_custom_call.1} parent=31 // pred_check_branch
          %190 = sbr.rel (%p188) target = $region36
        $region35: #{tpu_custom_call.1} parent=31 // pred_region
          %191 = dma.done %s184, 256
        $region36: #{tpu_custom_call.1} parent=31 // pred_fallthru
          _
        // Predicated region
        $region37: #{tpu_custom_call.1} parent=31 // pred_check
          %p192 = pneg %p63
        $region38: #{tpu_custom_call.1} parent=31 // pred_check_branch
          %194 = sbr.rel (%p192) target = $region40
        $region39: #{tpu_custom_call.1} parent=31 // pred_region
          %195 = dma.done [#allocation6], 256
        $region40: #{tpu_custom_call.1} parent=31 // pred_fallthru
          _
        // Predicated region
        $region41: #{tpu_custom_call.1} parent=31 // pred_check
          %p196 = pneg %p84
        $region42: #{tpu_custom_call.1} parent=31 // pred_check_branch
          %198 = sbr.rel (%p196) target = $region44
        $region43: #{tpu_custom_call.1} parent=31 // pred_region
          %199 = dma.done [#allocation6], 256
        $region44: #{tpu_custom_call.1} parent=31 // pred_fallthru
          _
        %s200 = sand.u32 %s29, 1
        %s201 = scalar_lea.sflag [#allocation3], %s200
        %s202 = sand.u32 %s29, 1
        %s203 = smul.addr %s202, 16
        %s204 = scalar_lea.vmem [#allocation2], %s203
        %p205 = pneg %p42
        %p206 = pneg %p39
        %p207 = pneg %p63
        %p208 = pneg %p60
        %p209 = pneg %p84
        %p210 = pneg %p81
        %p211 = pneg %p110
        %p212 = pneg %p107
        %s213 = sand.u32 %s97, 1
        %s214 = scalar_lea.sflag [#allocation4], %s213
        %s215 = sand.u32 %s97, 1
        %s216 = smul.addr %s215, 16
        %s217 = scalar_lea.vmem [#allocation8], %s216
        %v218 = vld [vmem:[%s187] sm:$0xff]
        %v219 = vld [vmem:[%s187 + $0x8] sm:$0xff]
        %v220 = vld [vmem:[#allocation7] sm:$0xff]
        %v221 = vld [vmem:[#allocation7 + $0x8] sm:$0xff]
        %vm222 = vcmask 130048
        %v224 = vsel %vm222, %v218, 0
        %v227 = vsel %vm222, %v219, 0
        %229 = vmatprep.subr.mxu0 0.0
        %230 = vmatpush1.msra.mxu0 0.0
        %231 = vmatprep.subr.mxu0 0.0
        %232 = vmatpush1.msra.mxu0 0.0
        %233 = vmatprep.subr.mxu0 0.0
        %234 = vmatpush1.msra.mxu0 0.0
        %235 = vmatprep.subr.mxu0 0.0
        %236 = vmatpush1.msra.mxu0 0.0
        %237 = vmatprep.subr.mxu0 0.0
        %238 = vmatpush1.msra.mxu0 0.0
        %239 = vmatprep.subr.mxu0 0.0
        %240 = vmatpush1.msra.mxu0 0.0
        %241 = vmatprep.subr.mxu0 0.0
        %242 = vmatpush1.msra.mxu0 0.0
        %243 = vmatprep.subr.mxu0 0.0
        %244 = vmatpush1.msra.mxu0 0.0
        %245 = vmatprep.subr.mxu0 0.0
        %246 = vmatpush1.msra.mxu0 0.0
        %247 = vmatprep.subr.mxu0 0.0
        %248 = vmatpush1.msra.mxu0 0.0
        %249 = vmatprep.subr.mxu0 0.0
        %250 = vmatpush1.msra.mxu0 0.0
        %251 = vmatprep.subr.mxu0 0.0
        %252 = vmatpush1.msra.mxu0 0.0
        %253 = vmatprep.subr.mxu0 0.0
        %254 = vmatpush1.msra.mxu0 0.0
        %255 = vmatprep.subr.mxu0 0.0
        %256 = vmatpush1.msra.mxu0 0.0
        %257 = vmatprep.subr.mxu0 0.0
        %258 = vmatpush1.msra.mxu0 %v221
        %259 = vmatprep.subr.mxu0 0.0
        %260 = vmatpush1.msra.mxu0 %v220
        %261 = vmatprep.subr.mxu0 0.0
        %262 = vmatpush2.msra.mxu0 0.0
        %263 = vmatprep.subr.mxu0 0.0
        %264 = vmatpush2.msra.mxu0 0.0
        %265 = vmatprep.subr.mxu0 0.0
        %266 = vmatpush2.msra.mxu0 0.0
        %267 = vmatprep.subr.mxu0 0.0
        %268 = vmatpush2.msra.mxu0 0.0
        %269 = vmatprep.subr.mxu0 0.0
        %270 = vmatpush2.msra.mxu0 0.0
        %271 = vmatprep.subr.mxu0 0.0
        %272 = vmatpush2.msra.mxu0 0.0
        %273 = vmatprep.subr.mxu0 0.0
        %274 = vmatpush2.msra.mxu0 0.0
        %275 = vmatprep.subr.mxu0 0.0
        %276 = vmatpush2.msra.mxu0 0.0
        %277 = vmatprep.subr.mxu0 0.0
        %278 = vmatpush2.msra.mxu0 0.0
        %279 = vmatprep.subr.mxu0 0.0
        %280 = vmatpush2.msra.mxu0 0.0
        %281 = vmatprep.subr.mxu0 0.0
        %282 = vmatpush2.msra.mxu0 0.0
        %283 = vmatprep.subr.mxu0 0.0
        %284 = vmatpush2.msra.mxu0 0.0
        %285 = vmatprep.subr.mxu0 0.0
        %286 = vmatpush2.msra.mxu0 0.0
        %287 = vmatprep.subr.mxu0 0.0
        %288 = vmatpush2.msra.mxu0 0.0
        %289 = vmatprep.subr.mxu0 0.0
        %290 = vmatpush2.msra.mxu0 0.0
        %291 = vmatprep.subr.mxu0 0.0
        %292 = vmatpush2.msra.mxu0 0.0
        %293 = vmatprep.mubr.f32.mxu0 0.0
        %294 = vmatmul.mubr.f32.gmra.mxu0 %v224
        %v295 = vpop.f32.mrf.mxu0
        %v296 = vadd.f32 0.0, %v295
        %v297 = vpop.f32.mrf.mxu0
        %298 = vmatprep.mubr.f32.mxu0 0.0
        %299 = vmatmul.mubr.f32.gmra.mxu0 %v227
        %v300 = vpop.f32.mrf.mxu0
        %v301 = vadd.f32 0.0, %v300
        %v302 = vpop.f32.mrf.mxu0
        %303 = vdwg.mxu0
        %v304 = vld [vmem:[#allocation5] sm:$0xff]
        %v305 = vld [vmem:[#allocation5 + $0x8] sm:$0xff]
        %v307 = vsel %vm222, %v304, 0
        %v310 = vsel %vm222, %v305, 0
        %312 = vmatprep.subr.mxu0 0.0
        %313 = vmatpush1.msra.mxu0 0.0
        %314 = vmatprep.subr.mxu0 0.0
        %315 = vmatpush1.msra.mxu0 0.0
        %316 = vmatprep.subr.mxu0 0.0
        %317 = vmatpush1.msra.mxu0 0.0
        %318 = vmatprep.subr.mxu0 0.0
        %319 = vmatpush1.msra.mxu0 0.0
        %320 = vmatprep.subr.mxu0 0.0
        %321 = vmatpush1.msra.mxu0 0.0
        %322 = vmatprep.subr.mxu0 0.0
        %323 = vmatpush1.msra.mxu0 0.0
        %324 = vmatprep.subr.mxu0 0.0
        %325 = vmatpush1.msra.mxu0 0.0
        %326 = vmatprep.subr.mxu0 0.0
        %327 = vmatpush1.msra.mxu0 0.0
        %328 = vmatprep.subr.mxu0 0.0
        %329 = vmatpush1.msra.mxu0 0.0
        %330 = vmatprep.subr.mxu0 0.0
        %331 = vmatpush1.msra.mxu0 0.0
        %332 = vmatprep.subr.mxu0 0.0
        %333 = vmatpush1.msra.mxu0 0.0
        %334 = vmatprep.subr.mxu0 0.0
        %335 = vmatpush1.msra.mxu0 0.0
        %336 = vmatprep.subr.mxu0 0.0
        %337 = vmatpush1.msra.mxu0 0.0
        %338 = vmatprep.subr.mxu0 0.0
        %339 = vmatpush1.msra.mxu0 0.0
        %340 = vmatprep.subr.mxu0 0.0
        %341 = vmatpush1.msra.mxu0 %v301
        %342 = vmatprep.subr.mxu0 0.0
        %343 = vmatpush1.msra.mxu0 %v296
        %344 = vmatprep.subr.mxu0 0.0
        %345 = vmatpush2.msra.mxu0 0.0
        %346 = vmatprep.subr.mxu0 0.0
        %347 = vmatpush2.msra.mxu0 0.0
        %348 = vmatprep.subr.mxu0 0.0
        %349 = vmatpush2.msra.mxu0 0.0
        %350 = vmatprep.subr.mxu0 0.0
        %351 = vmatpush2.msra.mxu0 0.0
        %352 = vmatprep.subr.mxu0 0.0
        %353 = vmatpush2.msra.mxu0 0.0
        %354 = vmatprep.subr.mxu0 0.0
        %355 = vmatpush2.msra.mxu0 0.0
        %356 = vmatprep.subr.mxu0 0.0
        %357 = vmatpush2.msra.mxu0 0.0
        %358 = vmatprep.subr.mxu0 0.0
        %359 = vmatpush2.msra.mxu0 0.0
        %360 = vmatprep.subr.mxu0 0.0
        %361 = vmatpush2.msra.mxu0 0.0
        %362 = vmatprep.subr.mxu0 0.0
        %363 = vmatpush2.msra.mxu0 0.0
        %364 = vmatprep.subr.mxu0 0.0
        %365 = vmatpush2.msra.mxu0 0.0
        %366 = vmatprep.subr.mxu0 0.0
        %367 = vmatpush2.msra.mxu0 0.0
        %368 = vmatprep.subr.mxu0 0.0
        %369 = vmatpush2.msra.mxu0 0.0
        %370 = vmatprep.subr.mxu0 0.0
        %371 = vmatpush2.msra.mxu0 0.0
        %372 = vmatprep.subr.mxu0 0.0
        %373 = vmatpush2.msra.mxu0 0.0
        %374 = vmatprep.subr.mxu0 0.0
        %375 = vmatpush2.msra.mxu0 0.0
        %376 = vmatprep.mubr.f32.mxu0 0.0
        %377 = vmatmul.mubr.f32.gmra.mxu0 %v307
        %v378 = vpop.f32.mrf.mxu0
        %v379 = vadd.f32 0.0, %v378
        %v380 = vpop.f32.mrf.mxu0
        %381 = vmatprep.mubr.f32.mxu0 0.0
        %382 = vmatmul.mubr.f32.gmra.mxu0 %v310
        %v383 = vpop.f32.mrf.mxu0
        %v384 = vadd.f32 0.0, %v383
        %v385 = vpop.f32.mrf.mxu0
        %386 = vdwg.mxu0
        %387 = vst.msk [vmem:[%s217] sm:$0xff] %vm222, %v379
        %388 = vst.msk [vmem:[%s217 + $0x8] sm:$0xff] %vm222, %v384
        %s389 = sand.u32 %s97, 1
        %s390 = scalar_lea.sflag [#allocation4], %s389
        %s391 = sand.u32 %s97, 1
        %s392 = smul.addr %s391, 16
        %s393 = scalar_lea.vmem [#allocation8], %s392
        // Predicated region
        $region45: #{tpu_custom_call.1} parent=31 // pred_check
          %p394 = pneg %p107
        $region46: #{tpu_custom_call.1} parent=31 // pred_check_branch
          %396 = sbr.rel (%p394) target = $region48
        $region47: #{tpu_custom_call.1} parent=31 // pred_region
          %s398 = ssub.s32 256, 256
          %399 = vsyncadd %s390, %s398
          %s400 = smul.addr %s21, 2
          %s401 = smul.addr %s400, 128
          %s402 = scalar_lea.hbm %s3, %s401
          %s403 = sshll.u32 %s393, 4
          %s404 = int_to_ptr.vmem [resolvable:$true] %s403
          %409 = dma.vmem_to_hbm [thread:$0]  %s404, 256, %s402, %s390, 128, 128, 8
        $region48: #{tpu_custom_call.1} parent=31 // pred_fallthru
          _
      $region32: #{tpu_custom_call.1} parent=5 // pred_fallthru
        _
      %p410 = scmp.le.s32.totalorder 2, %s16
      // Predicated region
      $region49: #{tpu_custom_call.1} parent=5 // pred_check
        %p411 = pneg %p410
      $region50: #{tpu_custom_call.1} parent=5 // pred_check_branch
        %413 = sbr.rel (%p411) target = $region52
      $region51: #{tpu_custom_call.1} parent=5 // pred_region
        %s414 = ssub.s32 %s16, 2
        // Predicated region
        $region53: #{tpu_custom_call.1} parent=51 // pred_check
          %p415 = pneg %p113
        $region54: #{tpu_custom_call.1} parent=51 // pred_check_branch
          %417 = sbr.rel (%p415) target = $region56
        $region55: #{tpu_custom_call.1} parent=51 // pred_region
          %s418 = sand.u32 %s98, 1
          %s419 = scalar_lea.sflag [#allocation4], %s418
          %s420 = sand.u32 %s98, 1
          %s421 = smul.addr %s420, 16
          %s422 = scalar_lea.vmem [#allocation8], %s421
          %423 = dma.done %s419, 256
        $region56: #{tpu_custom_call.1} parent=51 // pred_fallthru
          _
      $region52: #{tpu_custom_call.1} parent=5 // pred_fallthru
        _
    $region6: #{tpu_custom_call.1} parent=1 // loop_footer
      %s20 = sadd.s32 1, %s16
    $region7: #{tpu_custom_call.1} parent=1 // loop_footer_branch
      %15 = sbr.rel target = $region3
    $region8: #{tpu_custom_call.1} parent=1 // loop_exit
      _
    %424 = vsyncpa [#allocation3], 1
    %s425 = scalar_lea.sflag [#allocation3], 1
    %426 = vsyncpa %s425, 1
    %427 = vsyncpa [#allocation6], 1
    %428 = vsyncpa [#allocation4], 1
    %s429 = scalar_lea.sflag [#allocation4], 1
    %430 = vsyncpa %s429, 1

</llo_original>
